<compile_context>
chip_gen: v7x
topology: tpu7x:2x2x1
jax: 0.10.0
libtpu: 0.0.40
codegen_flags: <defaults>
</compile_context>

<pallas_src>
import functools

import jax
import jax.numpy as jnp
from jax import lax
from jax.experimental import pallas as pl
from jax.experimental.pallas import tpu as pltpu

LN_EPS = 1e-5          # torch.nn.LayerNorm default
EPSILON = 1e-4         # module epsilon added to sigma


def _softplus(x):
    # torch.nn.Softplus (beta=1, threshold=20): x > 20 -> x, else log(1+exp(x))
    return jnp.where(x > 20.0, x, jnp.log1p(jnp.exp(jnp.minimum(x, 20.0))))


def _make_kernel(n_layers, n_hidden, n_outputs):
    inv_h = 1.0 / float(n_hidden)

    def kernel(x_ref, wh_ref, ph_ref, wout_ref, whead_ref, btail_ref, out_ref):
        h = x_ref[...].astype(jnp.float32)

        # Small params loaded once per grid step (Python-unrolled: no repeated broadcasts).
        btail = btail_ref[...]                      # (2, 2*n_outputs)
        b_out = btail[0:1, :n_outputs]              # (1, n_outputs)
        b_head = btail[1:2, :]                      # (1, 2*n_outputs) = [b_mu | b_sig]

        for i in range(n_layers):
            w = wh_ref[i]                           # (n_hidden, n_hidden)
            b = ph_ref[3 * i: 3 * i + 1, :]         # (1, n_hidden)
            gamma = ph_ref[3 * i + 1: 3 * i + 2, :]
            beta = ph_ref[3 * i + 2: 3 * i + 3, :]

            h = jnp.dot(h, w, preferred_element_type=jnp.float32) + b
            h = jnp.maximum(h, 0.0)                 # ReLU
            # One-pass LayerNorm over the last axis: both XLU reductions back-to-back.
            s1 = jnp.sum(h, axis=-1, keepdims=True)
            s2 = jnp.sum(h * h, axis=-1, keepdims=True)
            mean = s1 * inv_h
            var = jnp.maximum(s2 * inv_h - mean * mean, 0.0)
            h = (h - mean) * lax.rsqrt(var + LN_EPS) * gamma + beta

        # Output layer + final activation (ReLU).
        out = jnp.dot(h, wout_ref[...], preferred_element_type=jnp.float32) + b_out
        out = jnp.maximum(out, 0.0)

        # Fused mu/sigma head: one MXU push producing [TILE_B, 2*n_outputs].
        z = jnp.dot(out, whead_ref[...], preferred_element_type=jnp.float32) + b_head
        col = lax.broadcasted_iota(jnp.int32, z.shape, 1)
        res = jnp.where(col < n_outputs, z, _softplus(z) + EPSILON)

        out_ref[...] = res.astype(out_ref.dtype)    # single lane-dense store

    return kernel


def _pack_params(params, n_inputs, n_outputs, n_hidden, n_layers):
    assert n_inputs <= n_hidden, "packing assumes n_inputs <= n_hidden (zero-pad scheme)"
    w_list = []
    for i in range(n_layers):
        w = params[f"w{i}"]                              # (d_in, n_hidden)
        if w.shape[0] < n_hidden:                        # zero-pad first-layer rows; x gets
            w = jnp.pad(w, ((0, n_hidden - w.shape[0]), (0, 0)))   # matching zero columns
        w_list.append(w)
    w_hidden = jnp.stack(w_list, axis=0)                 # (L, n_hidden, n_hidden)

    p_rows = []
    for i in range(n_layers):
        p_rows += [params[f"b{i}"], params[f"gamma{i}"], params[f"beta{i}"]]
    p_hidden = jnp.concatenate(p_rows, axis=0)           # (3L, n_hidden)

    w_head = jnp.concatenate([params["w_mu"], params["w_sig"]], axis=1)    # (n_out, 2*n_out)
    b_out_pad = jnp.pad(params["b_out"], ((0, 0), (0, n_outputs)))         # (1, 2*n_out)
    b_head = jnp.concatenate([params["b_mu"], params["b_sig"]], axis=1)    # (1, 2*n_out)
    b_tail = jnp.concatenate([b_out_pad, b_head], axis=0)                  # (2, 2*n_out)

    return w_hidden, p_hidden, params["w_out"], w_head, b_tail


def mlp_forward(x, params, *, n_inputs, n_outputs, n_hidden, n_layers, tile_b=128):
    """All compute runs inside one Pallas kernel, pipelined over a batch grid."""
    batch = x.shape[0]
    w_hidden, p_hidden, w_out, w_head, b_tail = _pack_params(
        params, n_inputs, n_outputs, n_hidden, n_layers)

    # Zero-pad x features to n_hidden (matches the zero-padded first-layer weight rows).
    if n_inputs < n_hidden:
        x = jnp.pad(x, ((0, 0), (0, n_hidden - n_inputs)))
    x = x.astype(jnp.float32)

    # Pad batch to a multiple of the batch tile.
    tile_b = min(tile_b, pl.cdiv(batch, 8) * 8)
    padded_b = pl.cdiv(batch, tile_b) * tile_b
    if padded_b != batch:
        x = jnp.pad(x, ((0, padded_b - batch), (0, 0)))
    grid = (padded_b // tile_b,)

    kernel = _make_kernel(n_layers, n_hidden, n_outputs)

    flops = 2 * padded_b * (n_layers * n_hidden * n_hidden
                            + n_hidden * n_outputs
                            + n_outputs * 2 * n_outputs)
    param_bytes = 4 * (w_hidden.size + p_hidden.size + w_out.size
                       + w_head.size + b_tail.size)
    cost = pl.CostEstimate(
        flops=flops,
        transcendentals=2 * padded_b * n_outputs,
        bytes_accessed=4 * (x.size + padded_b * 2 * n_outputs) + param_bytes,
    )

    const2 = lambda i: (0, 0)
    out = pl.pallas_call(
        kernel,
        out_shape=jax.ShapeDtypeStruct((padded_b, 2 * n_outputs), jnp.float32),
        grid=grid,
        in_specs=[
            pl.BlockSpec((tile_b, n_hidden), lambda i: (i, 0)),            # x: pipelined
            pl.BlockSpec((n_layers, n_hidden, n_hidden), lambda i: (0, 0, 0)),  # weights stay
            pl.BlockSpec((3 * n_layers, n_hidden), const2),                # VMEM-resident
            pl.BlockSpec((n_hidden, n_outputs), const2),
            pl.BlockSpec((n_outputs, 2 * n_outputs), const2),
            pl.BlockSpec((2, 2 * n_outputs), const2),
        ],
        out_specs=pl.BlockSpec((tile_b, 2 * n_outputs), lambda i: (i, 0)),
        compiler_params=pltpu.CompilerParams(dimension_semantics=("parallel",)),
        cost_estimate=cost,
    )(x, w_hidden, p_hidden, w_out, w_head, b_tail)

    mu = out[:batch, :n_outputs]
    sigma = out[:batch, n_outputs:]
    return mu, sigma


# ----------------------------- init / reference ------------------------------

def _xavier_uniform(key, fan_out, fan_in):
    bound = jnp.sqrt(6.0 / (fan_in + fan_out))
    return jax.random.uniform(key, (fan_in, fan_out), jnp.float32, -bound, bound)  # stored (in, out)


def _linear_default(key, fan_out, fan_in):
    bound = 1.0 / jnp.sqrt(float(fan_in))
    return jax.random.uniform(key, (fan_in, fan_out), jnp.float32, -bound, bound)  # stored (in, out)


def _bias(key, fan_out, fan_in):
    bound = 1.0 / jnp.sqrt(float(fan_in))
    return jax.random.uniform(key, (1, fan_out), jnp.float32, -bound, bound)


def init_params(key, n_inputs, n_outputs, n_hidden, n_layers):
    params = {}
    d_in = n_inputs
    for i in range(n_layers):
        key, k1, k2 = jax.random.split(key, 3)
        params[f"w{i}"] = _xavier_uniform(k1, n_hidden, d_in)     # init='xavier_uniform_'
        params[f"b{i}"] = _bias(k2, n_hidden, d_in)
        params[f"gamma{i}"] = jnp.ones((1, n_hidden), jnp.float32)
        params[f"beta{i}"] = jnp.zeros((1, n_hidden), jnp.float32)
        d_in = n_hidden
    key, k1, k2, k3, k4, k5, k6 = jax.random.split(key, 7)
    params["w_out"] = _linear_default(k1, n_outputs, n_hidden)
    params["b_out"] = _bias(k2, n_outputs, n_hidden)
    params["w_mu"] = _linear_default(k3, n_outputs, n_outputs)
    params["b_mu"] = _bias(k4, n_outputs, n_outputs)
    params["w_sig"] = _linear_default(k5, n_outputs, n_outputs)
    params["b_sig"] = _bias(k6, n_outputs, n_outputs)
    return params


def reference_forward(x, params, n_layers):
    """Pure-JAX reference (torch-faithful two-pass LayerNorm) for validation."""
    h = x
    for i in range(n_layers):
        h = jnp.maximum(h @ params[f"w{i}"] + params[f"b{i}"], 0.0)
        mean = jnp.mean(h, axis=-1, keepdims=True)
        var = jnp.mean((h - mean) ** 2, axis=-1, keepdims=True)
        h = (h - mean) / jnp.sqrt(var + LN_EPS) * params[f"gamma{i}"] + params[f"beta{i}"]
    out = jnp.maximum(h @ params["w_out"] + params["b_out"], 0.0)
    mu = out @ params["w_mu"] + params["b_mu"]
    sigma = _softplus(out @ params["w_sig"] + params["b_sig"]) + EPSILON
    return mu, sigma


if __name__ == "__main__":
    n_inputs, n_outputs, n_hidden, n_layers = 32, 16, 32, 2
    batch = 256          # small, but exercises the batch grid (2 steps of TILE_B=128)
    # dropout=0.0 -> no Dropout layers are added by the module's __init__.

    key = jax.random.PRNGKey(0)
    key, xk, pk = jax.random.split(key, 3)
    x = jax.random.normal(xk, (batch, n_inputs), jnp.float32)
    params = init_params(pk, n_inputs, n_outputs, n_hidden, n_layers)

    fwd = jax.jit(functools.partial(
        mlp_forward, n_inputs=n_inputs, n_outputs=n_outputs,
        n_hidden=n_hidden, n_layers=n_layers, tile_b=128))
    mu, sigma = fwd(x, params)
    jax.block_until_ready((mu, sigma))

    mu_ref, sigma_ref = reference_forward(x, params, n_layers)
    assert mu.shape == (batch, n_outputs) and sigma.shape == (batch, n_outputs)
    assert jnp.allclose(mu, mu_ref, atol=1e-4, rtol=1e-4), "mu mismatch"
    assert jnp.allclose(sigma, sigma_ref, atol=1e-4, rtol=1e-4), "sigma mismatch"
    assert bool(jnp.all(sigma > 0)), "sigma must be positive"

    print("KERNEL_OK")
</pallas_src>

<mosaic_0001>
module attributes {stable_mosaic.version = 11 : i64} {
  func.func @kernel(%arg0: i32, %arg1: memref<128x32xf32, #tpu.memory_space<vmem>>, %arg2: memref<2x32x32xf32, #tpu.memory_space<vmem>>, %arg3: memref<6x32xf32, #tpu.memory_space<vmem>>, %arg4: memref<32x16xf32, #tpu.memory_space<vmem>>, %arg5: memref<16x32xf32, #tpu.memory_space<vmem>>, %arg6: memref<2x32xf32, #tpu.memory_space<vmem>>, %arg7: memref<128x32xf32, #tpu.memory_space<vmem>>) attributes {dimension_semantics = [#tpu.dimension_semantics<parallel>], iteration_bounds = array<i64: 2>, scalar_prefetch = 0 : i64, scratch_operands = 0 : i64, tpu.core_type = #tpu.core_type<tc>, window_params = [{transform_indices = @transform_0, window_bounds = array<i64: 128, 32>}, {pipeline_mode = #tpu.pipeline_mode<synchronous>, transform_indices = @transform_1, window_bounds = array<i64: 2, 32, 32>}, {pipeline_mode = #tpu.pipeline_mode<synchronous>, transform_indices = @transform_2, window_bounds = array<i64: 6, 32>}, {pipeline_mode = #tpu.pipeline_mode<synchronous>, transform_indices = @transform_3, window_bounds = array<i64: 32, 16>}, {pipeline_mode = #tpu.pipeline_mode<synchronous>, transform_indices = @transform_4, window_bounds = array<i64: 16, 32>}, {pipeline_mode = #tpu.pipeline_mode<synchronous>, transform_indices = @transform_5, window_bounds = array<i64: 2, 32>}, {transform_indices = @transform_6, window_bounds = array<i64: 128, 32>}]} {
    %c0 = arith.constant 0 : index
    %c0_0 = arith.constant 0 : index
    %0 = vector.load %arg1[%c0, %c0_0] : memref<128x32xf32, #tpu.memory_space<vmem>>, vector<128x32xf32>
    %c0_1 = arith.constant 0 : index
    %c0_2 = arith.constant 0 : index
    %1 = vector.load %arg6[%c0_1, %c0_2] : memref<2x32xf32, #tpu.memory_space<vmem>>, vector<2x32xf32>
    %2 = vector.extract_strided_slice %1 {offsets = [0, 0], sizes = [1, 16], strides = [1, 1]} : vector<2x32xf32> to vector<1x16xf32>
    %3 = vector.extract_strided_slice %1 {offsets = [1, 0], sizes = [1, 32], strides = [1, 1]} : vector<2x32xf32> to vector<1x32xf32>
    %c0_3 = arith.constant 0 : index
    %c0_4 = arith.constant 0 : index
    %c0_5 = arith.constant 0 : index
    %4 = vector.load %arg2[%c0_3, %c0_4, %c0_5] : memref<2x32x32xf32, #tpu.memory_space<vmem>>, vector<1x32x32xf32>
    %5 = vector.shape_cast %4 : vector<1x32x32xf32> to vector<32x32xf32>
    %c0_6 = arith.constant 0 : index
    %c0_7 = arith.constant 0 : index
    %6 = vector.load %arg3[%c0_6, %c0_7] : memref<6x32xf32, #tpu.memory_space<vmem>>, vector<1x32xf32>
    %c1 = arith.constant 1 : index
    %c0_8 = arith.constant 0 : index
    %7 = vector.load %arg3[%c1, %c0_8] : memref<6x32xf32, #tpu.memory_space<vmem>>, vector<1x32xf32>
    %c2 = arith.constant 2 : index
    %c0_9 = arith.constant 0 : index
    %8 = vector.load %arg3[%c2, %c0_9] : memref<6x32xf32, #tpu.memory_space<vmem>>, vector<1x32xf32>
    %cst = arith.constant dense<0.000000e+00> : vector<128x32xf32>
    %9 = tpu.matmul %0, %5, %cst {dimension_numbers = #tpu.dot_dimension_numbers<[1], [0], [0], [1], [0, 0, 1, 1], [], []>} : vector<128x32xf32>, vector<32x32xf32>, vector<128x32xf32> -> vector<128x32xf32>
    %10 = vector.broadcast %6 : vector<1x32xf32> to vector<128x32xf32>
    %11 = arith.addf %9, %10 : vector<128x32xf32>
    %cst_10 = arith.constant 0.000000e+00 : f32
    %12 = vector.broadcast %cst_10 : f32 to vector<128x32xf32>
    %13 = arith.maximumf %11, %12 : vector<128x32xf32>
    %cst_11 = arith.constant dense<0.000000e+00> : vector<128xf32>
    %14 = vector.multi_reduction <add>, %13, %cst_11 [1] : vector<128x32xf32> to vector<128xf32>
    %15 = vector.shape_cast %14 : vector<128xf32> to vector<128x1xf32>
    %16 = arith.mulf %13, %13 : vector<128x32xf32>
    %cst_12 = arith.constant dense<0.000000e+00> : vector<128xf32>
    %17 = vector.multi_reduction <add>, %16, %cst_12 [1] : vector<128x32xf32> to vector<128xf32>
    %18 = vector.shape_cast %17 : vector<128xf32> to vector<128x1xf32>
    %cst_13 = arith.constant 3.125000e-02 : f32
    %19 = vector.broadcast %cst_13 : f32 to vector<128x1xf32>
    %20 = arith.mulf %15, %19 : vector<128x1xf32>
    %cst_14 = arith.constant 3.125000e-02 : f32
    %21 = vector.broadcast %cst_14 : f32 to vector<128x1xf32>
    %22 = arith.mulf %18, %21 : vector<128x1xf32>
    %23 = arith.mulf %20, %20 : vector<128x1xf32>
    %24 = arith.subf %22, %23 : vector<128x1xf32>
    %cst_15 = arith.constant 0.000000e+00 : f32
    %25 = vector.broadcast %cst_15 : f32 to vector<128x1xf32>
    %26 = arith.maximumf %24, %25 : vector<128x1xf32>
    %27 = vector.broadcast %20 : vector<128x1xf32> to vector<128x32xf32>
    %28 = arith.subf %13, %27 : vector<128x32xf32>
    %cst_16 = arith.constant 9.99999974E-6 : f32
    %29 = vector.broadcast %cst_16 : f32 to vector<128x1xf32>
    %30 = arith.addf %26, %29 : vector<128x1xf32>
    %31 = math.rsqrt %30 : vector<128x1xf32>
    %32 = vector.broadcast %31 : vector<128x1xf32> to vector<128x32xf32>
    %33 = arith.mulf %28, %32 : vector<128x32xf32>
    %34 = vector.broadcast %7 : vector<1x32xf32> to vector<128x32xf32>
    %35 = arith.mulf %33, %34 : vector<128x32xf32>
    %36 = vector.broadcast %8 : vector<1x32xf32> to vector<128x32xf32>
    %37 = arith.addf %35, %36 : vector<128x32xf32>
    %c1_17 = arith.constant 1 : index
    %c0_18 = arith.constant 0 : index
    %c0_19 = arith.constant 0 : index
    %38 = vector.load %arg2[%c1_17, %c0_18, %c0_19] : memref<2x32x32xf32, #tpu.memory_space<vmem>>, vector<1x32x32xf32>
    %39 = vector.shape_cast %38 : vector<1x32x32xf32> to vector<32x32xf32>
    %c3 = arith.constant 3 : index
    %c0_20 = arith.constant 0 : index
    %40 = vector.load %arg3[%c3, %c0_20] : memref<6x32xf32, #tpu.memory_space<vmem>>, vector<1x32xf32>
    %c4 = arith.constant 4 : index
    %c0_21 = arith.constant 0 : index
    %41 = vector.load %arg3[%c4, %c0_21] : memref<6x32xf32, #tpu.memory_space<vmem>>, vector<1x32xf32>
    %c5 = arith.constant 5 : index
    %c0_22 = arith.constant 0 : index
    %42 = vector.load %arg3[%c5, %c0_22] : memref<6x32xf32, #tpu.memory_space<vmem>>, vector<1x32xf32>
    %cst_23 = arith.constant dense<0.000000e+00> : vector<128x32xf32>
    %43 = tpu.matmul %37, %39, %cst_23 {dimension_numbers = #tpu.dot_dimension_numbers<[1], [0], [0], [1], [0, 0, 1, 1], [], []>} : vector<128x32xf32>, vector<32x32xf32>, vector<128x32xf32> -> vector<128x32xf32>
    %44 = vector.broadcast %40 : vector<1x32xf32> to vector<128x32xf32>
    %45 = arith.addf %43, %44 : vector<128x32xf32>
    %cst_24 = arith.constant 0.000000e+00 : f32
    %46 = vector.broadcast %cst_24 : f32 to vector<128x32xf32>
    %47 = arith.maximumf %45, %46 : vector<128x32xf32>
    %cst_25 = arith.constant dense<0.000000e+00> : vector<128xf32>
    %48 = vector.multi_reduction <add>, %47, %cst_25 [1] : vector<128x32xf32> to vector<128xf32>
    %49 = vector.shape_cast %48 : vector<128xf32> to vector<128x1xf32>
    %50 = arith.mulf %47, %47 : vector<128x32xf32>
    %cst_26 = arith.constant dense<0.000000e+00> : vector<128xf32>
    %51 = vector.multi_reduction <add>, %50, %cst_26 [1] : vector<128x32xf32> to vector<128xf32>
    %52 = vector.shape_cast %51 : vector<128xf32> to vector<128x1xf32>
    %cst_27 = arith.constant 3.125000e-02 : f32
    %53 = vector.broadcast %cst_27 : f32 to vector<128x1xf32>
    %54 = arith.mulf %49, %53 : vector<128x1xf32>
    %cst_28 = arith.constant 3.125000e-02 : f32
    %55 = vector.broadcast %cst_28 : f32 to vector<128x1xf32>
    %56 = arith.mulf %52, %55 : vector<128x1xf32>
    %57 = arith.mulf %54, %54 : vector<128x1xf32>
    %58 = arith.subf %56, %57 : vector<128x1xf32>
    %cst_29 = arith.constant 0.000000e+00 : f32
    %59 = vector.broadcast %cst_29 : f32 to vector<128x1xf32>
    %60 = arith.maximumf %58, %59 : vector<128x1xf32>
    %61 = vector.broadcast %54 : vector<128x1xf32> to vector<128x32xf32>
    %62 = arith.subf %47, %61 : vector<128x32xf32>
    %cst_30 = arith.constant 9.99999974E-6 : f32
    %63 = vector.broadcast %cst_30 : f32 to vector<128x1xf32>
    %64 = arith.addf %60, %63 : vector<128x1xf32>
    %65 = math.rsqrt %64 : vector<128x1xf32>
    %66 = vector.broadcast %65 : vector<128x1xf32> to vector<128x32xf32>
    %67 = arith.mulf %62, %66 : vector<128x32xf32>
    %68 = vector.broadcast %41 : vector<1x32xf32> to vector<128x32xf32>
    %69 = arith.mulf %67, %68 : vector<128x32xf32>
    %70 = vector.broadcast %42 : vector<1x32xf32> to vector<128x32xf32>
    %71 = arith.addf %69, %70 : vector<128x32xf32>
    %c0_31 = arith.constant 0 : index
    %c0_32 = arith.constant 0 : index
    %72 = vector.load %arg4[%c0_31, %c0_32] : memref<32x16xf32, #tpu.memory_space<vmem>>, vector<32x16xf32>
    %cst_33 = arith.constant dense<0.000000e+00> : vector<128x16xf32>
    %73 = tpu.matmul %71, %72, %cst_33 {dimension_numbers = #tpu.dot_dimension_numbers<[1], [0], [0], [1], [0, 0, 1, 1], [], []>} : vector<128x32xf32>, vector<32x16xf32>, vector<128x16xf32> -> vector<128x16xf32>
    %74 = vector.broadcast %2 : vector<1x16xf32> to vector<128x16xf32>
    %75 = arith.addf %73, %74 : vector<128x16xf32>
    %cst_34 = arith.constant 0.000000e+00 : f32
    %76 = vector.broadcast %cst_34 : f32 to vector<128x16xf32>
    %77 = arith.maximumf %75, %76 : vector<128x16xf32>
    %c0_35 = arith.constant 0 : index
    %c0_36 = arith.constant 0 : index
    %78 = vector.load %arg5[%c0_35, %c0_36] : memref<16x32xf32, #tpu.memory_space<vmem>>, vector<16x32xf32>
    %cst_37 = arith.constant dense<0.000000e+00> : vector<128x32xf32>
    %79 = tpu.matmul %77, %78, %cst_37 {dimension_numbers = #tpu.dot_dimension_numbers<[1], [0], [0], [1], [0, 0, 1, 1], [], []>} : vector<128x16xf32>, vector<16x32xf32>, vector<128x32xf32> -> vector<128x32xf32>
    %80 = vector.broadcast %3 : vector<1x32xf32> to vector<128x32xf32>
    %81 = arith.addf %79, %80 : vector<128x32xf32>
    %82 = tpu.iota {dimensions = array<i32: 1>} : vector<128x32xi32>
    %c16_i32 = arith.constant 16 : i32
    %83 = vector.broadcast %c16_i32 : i32 to vector<128x32xi32>
    %84 = arith.cmpi slt, %82, %83 : vector<128x32xi32>
    %cst_38 = arith.constant 2.000000e+01 : f32
    %85 = vector.broadcast %cst_38 : f32 to vector<128x32xf32>
    %86 = arith.cmpf ogt, %81, %85 : vector<128x32xf32>
    %cst_39 = arith.constant 2.000000e+01 : f32
    %87 = vector.broadcast %cst_39 : f32 to vector<128x32xf32>
    %88 = arith.minimumf %81, %87 : vector<128x32xf32>
    %89 = math.exp %88 : vector<128x32xf32>
    %90 = math.log1p %89 : vector<128x32xf32>
    %91 = arith.select %86, %81, %90 : vector<128x32xi1>, vector<128x32xf32>
    %cst_40 = arith.constant 9.99999974E-5 : f32
    %92 = vector.broadcast %cst_40 : f32 to vector<128x32xf32>
    %93 = arith.addf %91, %92 : vector<128x32xf32>
    %94 = arith.select %84, %81, %93 : vector<128x32xi1>, vector<128x32xf32>
    %c0_41 = arith.constant 0 : index
    %c0_42 = arith.constant 0 : index
    %95 = vector.load %arg7[%c0_41, %c0_42] : memref<128x32xf32, #tpu.memory_space<vmem>>, vector<128x32xf32>
    tpu.vector_store %arg7[%c0_41, %c0_42], %94 {strides = array<i32>} : memref<128x32xf32, #tpu.memory_space<vmem>>, vector<128x32xf32>,
    return
  }
  func.func @transform_0(%arg0: i32) -> (i32, i32) {
    %c0_i32 = arith.constant 0 : i32
    %c0_i32_0 = arith.constant 0 : i32
    return %arg0, %c0_i32 : i32, i32
  }
  func.func @transform_1(%arg0: i32) -> (i32, i32, i32) {
    %c0_i32 = arith.constant 0 : i32
    %c0_i32_0 = arith.constant 0 : i32
    %c0_i32_1 = arith.constant 0 : i32
    %c0_i32_2 = arith.constant 0 : i32
    return %c0_i32, %c0_i32_0, %c0_i32_1 : i32, i32, i32
  }
  func.func @transform_2(%arg0: i32) -> (i32, i32) {
    %c0_i32 = arith.constant 0 : i32
    %c0_i32_0 = arith.constant 0 : i32
    %c0_i32_1 = arith.constant 0 : i32
    return %c0_i32, %c0_i32_0 : i32, i32
  }
  func.func @transform_3(%arg0: i32) -> (i32, i32) {
    %c0_i32 = arith.constant 0 : i32
    %c0_i32_0 = arith.constant 0 : i32
    %c0_i32_1 = arith.constant 0 : i32
    return %c0_i32, %c0_i32_0 : i32, i32
  }
  func.func @transform_4(%arg0: i32) -> (i32, i32) {
    %c0_i32 = arith.constant 0 : i32
    %c0_i32_0 = arith.constant 0 : i32
    %c0_i32_1 = arith.constant 0 : i32
    return %c0_i32, %c0_i32_0 : i32, i32
  }
  func.func @transform_5(%arg0: i32) -> (i32, i32) {
    %c0_i32 = arith.constant 0 : i32
    %c0_i32_0 = arith.constant 0 : i32
    %c0_i32_1 = arith.constant 0 : i32
    return %c0_i32, %c0_i32_0 : i32, i32
  }
  func.func @transform_6(%arg0: i32) -> (i32, i32) {
    %c0_i32 = arith.constant 0 : i32
    %c0_i32_0 = arith.constant 0 : i32
    return %arg0, %c0_i32 : i32, i32
  }
}

</mosaic_0001>

<llo_original>
// kernel: mlp_forward.1
$region0: #{mlp_forward.1}
  #allocation0 [shape = 'u32[]', space=smem, size = 0x4, offset = 0x4, fixed_abs, tag = 'smem constant byte address 0x4 - core index']
  #allocation1 [shape = 'u32[144,128]{1,0:T(1,128)}', space=vmem, size = 0x12000, scoped, tag = 'internal scratch']
  %s0 = inlined_call_operand.vmem [shape: f32[256,32], index: 0, kind: input, shape index: {}]
  %s1 = inlined_call_operand.vmem [shape: f32[2,32,32], index: 1, kind: input, shape index: {}]
  %s2 = inlined_call_operand.vmem [shape: f32[6,32], index: 2, kind: input, shape index: {}]
  %s3 = inlined_call_operand.vmem [shape: f32[32,16], index: 3, kind: input, shape index: {}]
  %s4 = inlined_call_operand.vmem [shape: f32[16,32], index: 4, kind: input, shape index: {}]
  %s5 = inlined_call_operand.vmem [shape: f32[2,32], index: 5, kind: input, shape index: {}]
  %s6 = inlined_call_operand.vmem [shape: f32[256,32], index: 6, kind: output, shape index: {}]
  %s7 = sld [smem:[#allocation0]]
  $region57: #{mlp_forward.1} parent=0
    _
  %s9 = ssub.s32 1, %s7
  %s10 = scalar_select 0, %s9, %s7
  loop: start=0, step=1, limit=4
  $region2: #{mlp_forward.1} parent=0 // loop_pre_header
    _
  $region3: #{mlp_forward.1} parent=0 // loop_header
    %s12 = sphi 0, %s16
    %p13 = scmp.ge.s32.totalorder %s12, 4
    %s22 = sphi 0, %s24
    %s25 = sphi 0, %s22
    %s26 = sphi 0, %s25
    %s42 = sphi 0, %s26
    %s46 = sphi 0, %s46
    %s48 = sphi 0, %s46
    %s49 = sphi 0, %s48
    %s63 = sphi 0, %s49
    %s67 = sphi 0, %s67
    %s69 = sphi 0, %s67
    %s70 = sphi 0, %s69
    %s84 = sphi 0, %s70
    %s88 = sphi 0, %s88
    %s90 = sphi 0, %s88
    %s91 = sphi 0, %s90
    %s105 = sphi 0, %s91
    %s109 = sphi 0, %s109
    %s111 = sphi 0, %s109
    %s112 = sphi 0, %s111
    %s126 = sphi 0, %s112
    %s130 = sphi 0, %s130
    %s132 = sphi 0, %s130
    %s133 = sphi 0, %s132
    %s147 = sphi 0, %s133
    %s153 = sphi 0, %s155
    %s156 = sphi 0, %s153
    %s157 = sphi 0, %s156
    %s173 = sphi 0, %s157
  $region4: #{mlp_forward.1} parent=0 // loop_header_branch
    %15 = sbr.rel (%p13) target = $region8
  $region5: #{mlp_forward.1} parent=0 // loop_body
    %s17 = ssub.s32 %s12, 1
    %s18 = ssub.s32 %s12, 2
    %s19 = sadd.s32 %s12, 1
    %s20 = ssub.s32 %s12, %s19
    %p21 = scmp.eq.s32.totalorder %s20, 0
    %s23 = sadd.s32 %s22, 1
    %s24 = scalar_select %p21, %s22, %s23
    %p27 = pneg %p21
    %p28 = scmp.eq.s32.totalorder %s12, 1
    %p29 = por %p27, %p28
    %p30 = scmp.ne.s32.totalorder %s22, %s25
    %p31 = scmp.eq.s32.totalorder %s12, 0
    %p32 = por %p30, %p31
    %p33 = scmp.ne.s32.totalorder %s22, %s25
    %p34 = scmp.eq.s32.totalorder %s17, 1
    %p35 = por %p33, %p34
    %p36 = scmp.ne.s32.totalorder %s25, %s26
    %p37 = scmp.eq.s32.totalorder %s17, 0
    %p38 = por %p36, %p37
    %p39 = scmp.ne.s32.totalorder %s25, %s26
    %p40 = scmp.eq.s32.totalorder %s18, 1
    %p41 = por %p39, %p40
    %p43 = scmp.ne.s32.totalorder %s26, %s42
    %p44 = scmp.eq.s32.totalorder %s18, 0
    %p45 = por %p43, %p44
    %s47 = sadd.s32 %s46, 1
    %p50 = scmp.eq.s32.totalorder %s12, 1
    %p51 = scmp.ne.s32.totalorder %s46, %s48
    %p52 = scmp.eq.s32.totalorder %s12, 0
    %p53 = por %p51, %p52
    %p54 = scmp.ne.s32.totalorder %s46, %s48
    %p55 = scmp.eq.s32.totalorder %s17, 1
    %p56 = por %p54, %p55
    %p57 = scmp.ne.s32.totalorder %s48, %s49
    %p58 = scmp.eq.s32.totalorder %s17, 0
    %p59 = por %p57, %p58
    %p60 = scmp.ne.s32.totalorder %s48, %s49
    %p61 = scmp.eq.s32.totalorder %s18, 1
    %p62 = por %p60, %p61
    %p64 = scmp.ne.s32.totalorder %s49, %s63
    %p65 = scmp.eq.s32.totalorder %s18, 0
    %p66 = por %p64, %p65
    %s68 = sadd.s32 %s67, 1
    %p71 = scmp.eq.s32.totalorder %s12, 1
    %p72 = scmp.ne.s32.totalorder %s67, %s69
    %p73 = scmp.eq.s32.totalorder %s12, 0
    %p74 = por %p72, %p73
    %p75 = scmp.ne.s32.totalorder %s67, %s69
    %p76 = scmp.eq.s32.totalorder %s17, 1
    %p77 = por %p75, %p76
    %p78 = scmp.ne.s32.totalorder %s69, %s70
    %p79 = scmp.eq.s32.totalorder %s17, 0
    %p80 = por %p78, %p79
    %p81 = scmp.ne.s32.totalorder %s69, %s70
    %p82 = scmp.eq.s32.totalorder %s18, 1
    %p83 = por %p81, %p82
    %p85 = scmp.ne.s32.totalorder %s70, %s84
    %p86 = scmp.eq.s32.totalorder %s18, 0
    %p87 = por %p85, %p86
    %s89 = sadd.s32 %s88, 1
    %p92 = scmp.eq.s32.totalorder %s12, 1
    %p93 = scmp.ne.s32.totalorder %s88, %s90
    %p94 = scmp.eq.s32.totalorder %s12, 0
    %p95 = por %p93, %p94
    %p96 = scmp.ne.s32.totalorder %s88, %s90
    %p97 = scmp.eq.s32.totalorder %s17, 1
    %p98 = por %p96, %p97
    %p99 = scmp.ne.s32.totalorder %s90, %s91
    %p100 = scmp.eq.s32.totalorder %s17, 0
    %p101 = por %p99, %p100
    %p102 = scmp.ne.s32.totalorder %s90, %s91
    %p103 = scmp.eq.s32.totalorder %s18, 1
    %p104 = por %p102, %p103
    %p106 = scmp.ne.s32.totalorder %s91, %s105
    %p107 = scmp.eq.s32.totalorder %s18, 0
    %p108 = por %p106, %p107
    %s110 = sadd.s32 %s109, 1
    %p113 = scmp.eq.s32.totalorder %s12, 1
    %p114 = scmp.ne.s32.totalorder %s109, %s111
    %p115 = scmp.eq.s32.totalorder %s12, 0
    %p116 = por %p114, %p115
    %p117 = scmp.ne.s32.totalorder %s109, %s111
    %p118 = scmp.eq.s32.totalorder %s17, 1
    %p119 = por %p117, %p118
    %p120 = scmp.ne.s32.totalorder %s111, %s112
    %p121 = scmp.eq.s32.totalorder %s17, 0
    %p122 = por %p120, %p121
    %p123 = scmp.ne.s32.totalorder %s111, %s112
    %p124 = scmp.eq.s32.totalorder %s18, 1
    %p125 = por %p123, %p124
    %p127 = scmp.ne.s32.totalorder %s112, %s126
    %p128 = scmp.eq.s32.totalorder %s18, 0
    %p129 = por %p127, %p128
    %s131 = sadd.s32 %s130, 1
    %p134 = scmp.eq.s32.totalorder %s12, 1
    %p135 = scmp.ne.s32.totalorder %s130, %s132
    %p136 = scmp.eq.s32.totalorder %s12, 0
    %p137 = por %p135, %p136
    %p138 = scmp.ne.s32.totalorder %s130, %s132
    %p139 = scmp.eq.s32.totalorder %s17, 1
    %p140 = por %p138, %p139
    %p141 = scmp.ne.s32.totalorder %s132, %s133
    %p142 = scmp.eq.s32.totalorder %s17, 0
    %p143 = por %p141, %p142
    %p144 = scmp.ne.s32.totalorder %s132, %s133
    %p145 = scmp.eq.s32.totalorder %s18, 1
    %p146 = por %p144, %p145
    %p148 = scmp.ne.s32.totalorder %s133, %s147
    %p149 = scmp.eq.s32.totalorder %s18, 0
    %p150 = por %p148, %p149
    %s151 = ssub.s32 %s12, %s19
    %p152 = scmp.eq.s32.totalorder %s151, 0
    %s154 = sadd.s32 %s153, 1
    %s155 = scalar_select %p152, %s153, %s154
    %p158 = pneg %p152
    %p159 = scmp.eq.s32.totalorder %s12, 1
    %p160 = por %p158, %p159
    %p161 = scmp.ne.s32.totalorder %s153, %s156
    %p162 = scmp.eq.s32.totalorder %s12, 0
    %p163 = por %p161, %p162
    %p164 = scmp.ne.s32.totalorder %s153, %s156
    %p165 = scmp.eq.s32.totalorder %s17, 1
    %p166 = por %p164, %p165
    %p167 = scmp.ne.s32.totalorder %s156, %s157
    %p168 = scmp.eq.s32.totalorder %s17, 0
    %p169 = por %p167, %p168
    %p170 = scmp.ne.s32.totalorder %s156, %s157
    %p171 = scmp.eq.s32.totalorder %s18, 1
    %p172 = por %p170, %p171
    %p174 = scmp.ne.s32.totalorder %s157, %s173
    %p175 = scmp.eq.s32.totalorder %s18, 0
    %p176 = por %p174, %p175
    %p177 = scmp.le.s32.totalorder 1, %s12
    %p178 = scmp.lt.s32.totalorder %s12, 3
    %p179 = pnand %p177, %p178
    %p180 = pneg %p179
    // Predicated region
    $region9: #{mlp_forward.1} parent=5 // pred_check
      _
    $region10: #{mlp_forward.1} parent=5 // pred_check_branch
      %182 = sbr.rel (%p179) target = $region12
    $region11: #{mlp_forward.1} parent=5 // pred_region
      %s183 = ssub.s32 %s12, 1
      // Predicated region
      $region13: #{mlp_forward.1} parent=11 // pred_check
        %p184 = pneg %p59
      $region14: #{mlp_forward.1} parent=11 // pred_check_branch
        %186 = sbr.rel (%p184) target = $region16
      $region15: #{mlp_forward.1} parent=11 // pred_region
        _
      $region16: #{mlp_forward.1} parent=11 // pred_fallthru
        _
      // Predicated region
      $region17: #{mlp_forward.1} parent=11 // pred_check
        %p187 = pneg %p80
      $region18: #{mlp_forward.1} parent=11 // pred_check_branch
        %189 = sbr.rel (%p187) target = $region20
      $region19: #{mlp_forward.1} parent=11 // pred_region
        _
      $region20: #{mlp_forward.1} parent=11 // pred_fallthru
        _
      // Predicated region
      $region21: #{mlp_forward.1} parent=11 // pred_check
        %p190 = pneg %p101
      $region22: #{mlp_forward.1} parent=11 // pred_check_branch
        %192 = sbr.rel (%p190) target = $region24
      $region23: #{mlp_forward.1} parent=11 // pred_region
        _
      $region24: #{mlp_forward.1} parent=11 // pred_fallthru
        _
      // Predicated region
      $region25: #{mlp_forward.1} parent=11 // pred_check
        %p193 = pneg %p122
      $region26: #{mlp_forward.1} parent=11 // pred_check_branch
        %195 = sbr.rel (%p193) target = $region28
      $region27: #{mlp_forward.1} parent=11 // pred_region
        _
      $region28: #{mlp_forward.1} parent=11 // pred_fallthru
        _
      // Predicated region
      $region29: #{mlp_forward.1} parent=11 // pred_check
        %p196 = pneg %p143
      $region30: #{mlp_forward.1} parent=11 // pred_check_branch
        %198 = sbr.rel (%p196) target = $region32
      $region31: #{mlp_forward.1} parent=11 // pred_region
        _
      $region32: #{mlp_forward.1} parent=11 // pred_fallthru
        _
    $region12: #{mlp_forward.1} parent=5 // pred_fallthru
      _
    %p199 = scmp.lt.s32.totalorder %s12, 2
    // Predicated region
    $region33: #{mlp_forward.1} parent=5 // pred_check
      %p200 = pneg %p199
    $region34: #{mlp_forward.1} parent=5 // pred_check_branch
      %202 = sbr.rel (%p200) target = $region36
    $region35: #{mlp_forward.1} parent=5 // pred_region
      // Predicated region
      $region37: #{mlp_forward.1} parent=35 // pred_check
        %p203 = pneg %p32
      $region38: #{mlp_forward.1} parent=35 // pred_check_branch
        %205 = sbr.rel (%p203) target = $region40
      $region39: #{mlp_forward.1} parent=35 // pred_region
        %s206 = smul.u32 16, %s12
        %p207 = scmp.lt.s32.totalorder %s206, 31
        %s208 = scalar_select %p207, %s206, 31
        %s209 = smul.addr %s208, 8
        %s210 = scalar_lea.vmem %s0, %s209
        %s211 = smul.u32 16, %s12
      $region40: #{mlp_forward.1} parent=35 // pred_fallthru
        _
    $region36: #{mlp_forward.1} parent=5 // pred_fallthru
      _
    %p212 = scmp.le.s32.totalorder 1, %s12
    %p213 = scmp.lt.s32.totalorder %s12, 3
    %p214 = pnand %p212, %p213
    %p215 = pneg %p214
    // Predicated region
    $region41: #{mlp_forward.1} parent=5 // pred_check
      _
    $region42: #{mlp_forward.1} parent=5 // pred_check_branch
      %217 = sbr.rel (%p214) target = $region44
    $region43: #{mlp_forward.1} parent=5 // pred_region
      %s218 = ssub.s32 %s12, 1
      %s219 = smul.u32 16, %s17
      %p220 = scmp.lt.s32.totalorder %s219, 31
      %s221 = scalar_select %p220, %s219, 31
      %s222 = smul.addr %s221, 8
      %s223 = scalar_lea.vmem %s0, %s222
      %p224 = pneg %p38
      %p225 = pneg %p35
      %p226 = pneg %p59
      %p227 = pneg %p56
      %p228 = pneg %p80
      %p229 = pneg %p77
      %p230 = pneg %p101
      %p231 = pneg %p98
      %p232 = pneg %p122
      %p233 = pneg %p119
      %p234 = pneg %p143
      %p235 = pneg %p140
      %p236 = pneg %p169
      %p237 = pneg %p166
      %s238 = smul.u32 16, %s17
      %p239 = scmp.lt.s32.totalorder %s238, 31
      %s240 = scalar_select %p239, %s238, 31
      %s241 = smul.addr %s240, 8
      %s242 = scalar_lea.vmem %s6, %s241
      %s243 = smul.u32 16, %s17
      %p244 = scmp.lt.s32.totalorder %s243, 31
      %s245 = scalar_select %p244, %s243, 31
      %s246 = smul.addr %s245, 8
      %s247 = scalar_lea.vmem %s0, %s246
      %s248 = smul.u32 16, %s17
      %s249 = smul.u32 16, %s17
      %p250 = scmp.lt.s32.totalorder %s249, 31
      %s251 = scalar_select %p250, %s249, 31
      %s252 = smul.addr %s251, 8
      %s253 = scalar_lea.vmem %s6, %s252
      %s254 = smul.u32 16, %s17
      %v255 = vld [vmem:[%s247] sm:$0xff]
      %v256 = vld [vmem:[%s247 + $0x8] sm:$0xff]
      %v257 = vld [vmem:[%s247 + $0x10] sm:$0xff]
      %v258 = vld [vmem:[%s247 + $0x18] sm:$0xff]
      %v259 = vld [vmem:[%s247 + $0x20] sm:$0xff]
      %v260 = vld [vmem:[%s247 + $0x28] sm:$0xff]
      %v261 = vld [vmem:[%s247 + $0x30] sm:$0xff]
      %v262 = vld [vmem:[%s247 + $0x38] sm:$0xff]
      %v263 = vld [vmem:[%s247 + $0x40] sm:$0xff]
      %v264 = vld [vmem:[%s247 + $0x48] sm:$0xff]
      %v265 = vld [vmem:[%s247 + $0x50] sm:$0xff]
      %v266 = vld [vmem:[%s247 + $0x58] sm:$0xff]
      %v267 = vld [vmem:[%s247 + $0x60] sm:$0xff]
      %v268 = vld [vmem:[%s247 + $0x68] sm:$0xff]
      %v269 = vld [vmem:[%s247 + $0x70] sm:$0xff]
      %v270 = vld [vmem:[%s247 + $0x78] sm:$0xff]
      %v271 = vld [vmem:[%s5] sm:$0x3]
      %v272 = vld [vmem:[%s1] sm:$0xff]
      %v273 = vld [vmem:[%s1 + $0x8] sm:$0xff]
      %v274 = vld [vmem:[%s1 + $0x10] sm:$0xff]
      %v275 = vld [vmem:[%s1 + $0x18] sm:$0xff]
      %v276 = vld [vmem:[%s2] sm:$0x1]
      %v277 = vld [vmem:[%s2 + $0x1] sm:$0x1]
      %v278 = vld [vmem:[%s2 + $0x2] sm:$0x1]
      %v279 = vlaneseq
      %v280 = vshrl.u32 %v279, 7
      %v281 = vsub.s32 0, %v280
      %v282 = vrot.slane %v276, %v281
      %vm283 = vcmask 261120
      %v285 = vsel %vm283, %v255, 0
      %v288 = vsel %vm283, %v256, 0
      %v291 = vsel %vm283, %v257, 0
      %v294 = vsel %vm283, %v258, 0
      %v297 = vsel %vm283, %v259, 0
      %v300 = vsel %vm283, %v260, 0
      %v303 = vsel %vm283, %v261, 0
      %v306 = vsel %vm283, %v262, 0
      %v309 = vsel %vm283, %v263, 0
      %v312 = vsel %vm283, %v264, 0
      %v315 = vsel %vm283, %v265, 0
      %v318 = vsel %vm283, %v266, 0
      %v321 = vsel %vm283, %v267, 0
      %v324 = vsel %vm283, %v268, 0
      %v327 = vsel %vm283, %v269, 0
      %v330 = vsel %vm283, %v270, 0
      %332 = vmatprep.subr.mxu0 0.0
      %333 = vmatpush1.msra.mxu0 %v272
      %334 = vmatprep.subr.mxu0 0.0
      %335 = vmatpush1.msra.mxu0 %v273
      %336 = vmatprep.subr.mxu0 0.0
      %337 = vmatpush1.msra.mxu0 %v274
      %338 = vmatprep.subr.mxu0 0.0
      %339 = vmatpush1.msra.mxu0 %v275
      %340 = vmatprep.subr.mxu0 0.0
      %341 = vmatpush1.msra.mxu0 0.0
      %342 = vmatprep.subr.mxu0 0.0
      %343 = vmatpush1.msra.mxu0 0.0
      %344 = vmatprep.subr.mxu0 0.0
      %345 = vmatpush1.msra.mxu0 0.0
      %346 = vmatprep.subr.mxu0 0.0
      %347 = vmatpush1.msra.mxu0 0.0
      %348 = vmatprep.subr.mxu0 0.0
      %349 = vmatpush1.msra.mxu0 0.0
      %350 = vmatprep.subr.mxu0 0.0
      %351 = vmatpush1.msra.mxu0 0.0
      %352 = vmatprep.subr.mxu0 0.0
      %353 = vmatpush1.msra.mxu0 0.0
      %354 = vmatprep.subr.mxu0 0.0
      %355 = vmatpush1.msra.mxu0 0.0
      %356 = vmatprep.subr.mxu0 0.0
      %357 = vmatpush1.msra.mxu0 0.0
      %358 = vmatprep.subr.mxu0 0.0
      %359 = vmatpush1.msra.mxu0 0.0
      %360 = vmatprep.subr.mxu0 0.0
      %361 = vmatpush1.msra.mxu0 0.0
      %362 = vmatprep.subr.mxu0 0.0
      %363 = vmatpush1.msra.mxu0 0.0
      %364 = vmatprep.subr.mxu0 0.0
      %365 = vmatpush1.msra.mxu0 0.0
      %366 = vmatprep.subr.mxu0 0.0
      %367 = vmatpush1.msra.mxu0 0.0
      %368 = vmatprep.subr.mxu0 0.0
      %369 = vmatpush1.msra.mxu0 0.0
      %370 = vmatprep.subr.mxu0 0.0
      %371 = vmatpush1.msra.mxu0 0.0
      %372 = vmatprep.subr.mxu0 0.0
      %373 = vmatpush1.msra.mxu0 0.0
      %374 = vmatprep.subr.mxu0 0.0
      %375 = vmatpush1.msra.mxu0 0.0
      %376 = vmatprep.subr.mxu0 0.0
      %377 = vmatpush1.msra.mxu0 0.0
      %378 = vmatprep.subr.mxu0 0.0
      %379 = vmatpush1.msra.mxu0 0.0
      %380 = vmatprep.subr.mxu0 0.0
      %381 = vmatpush1.msra.mxu0 0.0
      %382 = vmatprep.subr.mxu0 0.0
      %383 = vmatpush1.msra.mxu0 0.0
      %384 = vmatprep.subr.mxu0 0.0
      %385 = vmatpush1.msra.mxu0 0.0
      %386 = vmatprep.subr.mxu0 0.0
      %387 = vmatpush1.msra.mxu0 0.0
      %388 = vmatprep.subr.mxu0 0.0
      %389 = vmatpush1.msra.mxu0 0.0
      %390 = vmatprep.subr.mxu0 0.0
      %391 = vmatpush1.msra.mxu0 0.0
      %392 = vmatprep.subr.mxu0 0.0
      %393 = vmatpush1.msra.mxu0 0.0
      %394 = vmatprep.subr.mxu0 0.0
      %395 = vmatpush1.msra.mxu0 0.0
      %396 = vmatprep.mubr.f32.mxu0 0.0
      %397 = vmatmul.mubr.f32.gmra.mrb[0].mxu0 %v285
      %v398 = vpop.f32.mrb[0].mxu0
      %v399 = vadd.f32 %v282, %v398
      %v400 = vpop.f32.mrb[0].mxu0
      %401 = vmatprep.mubr.f32.mxu0 0.0
      %402 = vmatmul.mubr.f32.gmra.mrb[0].mxu0 %v288
      %v403 = vpop.f32.mrb[0].mxu0
      %v404 = vadd.f32 %v282, %v403
      %v405 = vpop.f32.mrb[0].mxu0
      %406 = vmatprep.mubr.f32.mxu0 0.0
      %407 = vmatmul.mubr.f32.gmra.mrb[0].mxu0 %v291
      %v408 = vpop.f32.mrb[0].mxu0
      %v409 = vadd.f32 %v282, %v408
      %v410 = vpop.f32.mrb[0].mxu0
      %411 = vmatprep.mubr.f32.mxu0 0.0
      %412 = vmatmul.mubr.f32.gmra.mrb[0].mxu0 %v294
      %v413 = vpop.f32.mrb[0].mxu0
      %v414 = vadd.f32 %v282, %v413
      %v415 = vpop.f32.mrb[0].mxu0
      %416 = vmatprep.mubr.f32.mxu0 0.0
      %417 = vmatmul.mubr.f32.gmra.mrb[0].mxu0 %v297
      %v418 = vpop.f32.mrb[0].mxu0
      %v419 = vadd.f32 %v282, %v418
      %v420 = vpop.f32.mrb[0].mxu0
      %421 = vmatprep.mubr.f32.mxu0 0.0
      %422 = vmatmul.mubr.f32.gmra.mrb[0].mxu0 %v300
      %v423 = vpop.f32.mrb[0].mxu0
      %v424 = vadd.f32 %v282, %v423
      %v425 = vpop.f32.mrb[0].mxu0
      %426 = vmatprep.mubr.f32.mxu0 0.0
      %427 = vmatmul.mubr.f32.gmra.mrb[0].mxu0 %v303
      %v428 = vpop.f32.mrb[0].mxu0
      %v429 = vadd.f32 %v282, %v428
      %v430 = vpop.f32.mrb[0].mxu0
      %431 = vmatprep.mubr.f32.mxu0 0.0
      %432 = vmatmul.mubr.f32.gmra.mrb[0].mxu0 %v306
      %v433 = vpop.f32.mrb[0].mxu0
      %v434 = vadd.f32 %v282, %v433
      %v435 = vpop.f32.mrb[0].mxu0
      %436 = vmatprep.mubr.f32.mxu0 0.0
      %437 = vmatmul.mubr.f32.gmra.mrb[0].mxu0 %v309
      %v438 = vpop.f32.mrb[0].mxu0
      %v439 = vadd.f32 %v282, %v438
      %v440 = vpop.f32.mrb[0].mxu0
      %441 = vmatprep.mubr.f32.mxu0 0.0
      %442 = vmatmul.mubr.f32.gmra.mrb[0].mxu0 %v312
      %v443 = vpop.f32.mrb[0].mxu0
      %v444 = vadd.f32 %v282, %v443
      %v445 = vpop.f32.mrb[0].mxu0
      %446 = vmatprep.mubr.f32.mxu0 0.0
      %447 = vmatmul.mubr.f32.gmra.mrb[0].mxu0 %v315
      %v448 = vpop.f32.mrb[0].mxu0
      %v449 = vadd.f32 %v282, %v448
      %v450 = vpop.f32.mrb[0].mxu0
      %451 = vmatprep.mubr.f32.mxu0 0.0
      %452 = vmatmul.mubr.f32.gmra.mrb[0].mxu0 %v318
      %v453 = vpop.f32.mrb[0].mxu0
      %v454 = vadd.f32 %v282, %v453
      %v455 = vpop.f32.mrb[0].mxu0
      %456 = vmatprep.mubr.f32.mxu0 0.0
      %457 = vmatmul.mubr.f32.gmra.mrb[0].mxu0 %v321
      %v458 = vpop.f32.mrb[0].mxu0
      %v459 = vadd.f32 %v282, %v458
      %v460 = vpop.f32.mrb[0].mxu0
      %461 = vmatprep.mubr.f32.mxu0 0.0
      %462 = vmatmul.mubr.f32.gmra.mrb[0].mxu0 %v324
      %v463 = vpop.f32.mrb[0].mxu0
      %v464 = vadd.f32 %v282, %v463
      %v465 = vpop.f32.mrb[0].mxu0
      %466 = vmatprep.mubr.f32.mxu0 0.0
      %467 = vmatmul.mubr.f32.gmra.mrb[0].mxu0 %v327
      %v468 = vpop.f32.mrb[0].mxu0
      %v469 = vadd.f32 %v282, %v468
      %v470 = vpop.f32.mrb[0].mxu0
      %471 = vmatprep.mubr.f32.mxu0 0.0
      %472 = vmatmul.mubr.f32.gmra.mrb[0].mxu0 %v330
      %v473 = vpop.f32.mrb[0].mxu0
      %v474 = vadd.f32 %v282, %v473
      %v475 = vpop.f32.mrb[0].mxu0
      %476 = vdwg.mxu0
      %v477 = vmax.f32 %v399, 0.0
      %v478 = vmax.f32 %v404, 0.0
      %v479 = vmax.f32 %v409, 0.0
      %v480 = vmax.f32 %v414, 0.0
      %v481 = vmax.f32 %v419, 0.0
      %v482 = vmax.f32 %v424, 0.0
      %v483 = vmax.f32 %v429, 0.0
      %v484 = vmax.f32 %v434, 0.0
      %v485 = vmax.f32 %v439, 0.0
      %v486 = vmax.f32 %v444, 0.0
      %v487 = vmax.f32 %v449, 0.0
      %v488 = vmax.f32 %v454, 0.0
      %v489 = vmax.f32 %v459, 0.0
      %v490 = vmax.f32 %v464, 0.0
      %v491 = vmax.f32 %v469, 0.0
      %v492 = vmax.f32 %v474, 0.0
      %v493 = vsel %vm283, %v477, 0.0
      %494 = vadd.xlane.f32.xlu0 %v493
      %v495 = vpop.xlane.xlu0 %494
      %v496 = vsel %vm283, %v478, 0.0
      %497 = vadd.xlane.f32.xlu0 %v496
      %v498 = vpop.xlane.xlu0 %497
      %v499 = vsel %vm283, %v479, 0.0
      %500 = vadd.xlane.f32.xlu0 %v499
      %v501 = vpop.xlane.xlu0 %500
      %v502 = vsel %vm283, %v480, 0.0
      %503 = vadd.xlane.f32.xlu0 %v502
      %v504 = vpop.xlane.xlu0 %503
      %v505 = vsel %vm283, %v481, 0.0
      %506 = vadd.xlane.f32.xlu0 %v505
      %v507 = vpop.xlane.xlu0 %506
      %v508 = vsel %vm283, %v482, 0.0
      %509 = vadd.xlane.f32.xlu0 %v508
      %v510 = vpop.xlane.xlu0 %509
      %v511 = vsel %vm283, %v483, 0.0
      %512 = vadd.xlane.f32.xlu0 %v511
      %v513 = vpop.xlane.xlu0 %512
      %v514 = vsel %vm283, %v484, 0.0
      %515 = vadd.xlane.f32.xlu0 %v514
      %v516 = vpop.xlane.xlu0 %515
      %v517 = vsel %vm283, %v485, 0.0
      %518 = vadd.xlane.f32.xlu0 %v517
      %v519 = vpop.xlane.xlu0 %518
      %v520 = vsel %vm283, %v486, 0.0
      %521 = vadd.xlane.f32.xlu0 %v520
      %v522 = vpop.xlane.xlu0 %521
      %v523 = vsel %vm283, %v487, 0.0
      %524 = vadd.xlane.f32.xlu0 %v523
      %v525 = vpop.xlane.xlu0 %524
      %v526 = vsel %vm283, %v488, 0.0
      %527 = vadd.xlane.f32.xlu0 %v526
      %v528 = vpop.xlane.xlu0 %527
      %v529 = vsel %vm283, %v489, 0.0
      %530 = vadd.xlane.f32.xlu0 %v529
      %v531 = vpop.xlane.xlu0 %530
      %v532 = vsel %vm283, %v490, 0.0
      %533 = vadd.xlane.f32.xlu0 %v532
      %v534 = vpop.xlane.xlu0 %533
      %v535 = vsel %vm283, %v491, 0.0
      %536 = vadd.xlane.f32.xlu0 %v535
      %v537 = vpop.xlane.xlu0 %536
      %v538 = vsel %vm283, %v492, 0.0
      %539 = vadd.xlane.f32.xlu0 %v538
      %v540 = vpop.xlane.xlu0 %539
      %v541 = vmul.f32 %v477, %v477
      %v542 = vmul.f32 %v478, %v478
      %v543 = vmul.f32 %v479, %v479
      %v544 = vmul.f32 %v480, %v480
      %v545 = vmul.f32 %v481, %v481
      %v546 = vmul.f32 %v482, %v482
      %v547 = vmul.f32 %v483, %v483
      %v548 = vmul.f32 %v484, %v484
      %v549 = vmul.f32 %v485, %v485
      %v550 = vmul.f32 %v486, %v486
      %v551 = vmul.f32 %v487, %v487
      %v552 = vmul.f32 %v488, %v488
      %v553 = vmul.f32 %v489, %v489
      %v554 = vmul.f32 %v490, %v490
      %v555 = vmul.f32 %v491, %v491
      %v556 = vmul.f32 %v492, %v492
      %v557 = vsel %vm283, %v541, 0.0
      %558 = vadd.xlane.f32.xlu0 %v557
      %v559 = vpop.xlane.xlu0 %558
      %v560 = vsel %vm283, %v542, 0.0
      %561 = vadd.xlane.f32.xlu0 %v560
      %v562 = vpop.xlane.xlu0 %561
      %v563 = vsel %vm283, %v543, 0.0
      %564 = vadd.xlane.f32.xlu0 %v563
      %v565 = vpop.xlane.xlu0 %564
      %v566 = vsel %vm283, %v544, 0.0
      %567 = vadd.xlane.f32.xlu0 %v566
      %v568 = vpop.xlane.xlu0 %567
      %v569 = vsel %vm283, %v545, 0.0
      %570 = vadd.xlane.f32.xlu0 %v569
      %v571 = vpop.xlane.xlu0 %570
      %v572 = vsel %vm283, %v546, 0.0
      %573 = vadd.xlane.f32.xlu0 %v572
      %v574 = vpop.xlane.xlu0 %573
      %v575 = vsel %vm283, %v547, 0.0
      %576 = vadd.xlane.f32.xlu0 %v575
      %v577 = vpop.xlane.xlu0 %576
      %v578 = vsel %vm283, %v548, 0.0
      %579 = vadd.xlane.f32.xlu0 %v578
      %v580 = vpop.xlane.xlu0 %579
      %v581 = vsel %vm283, %v549, 0.0
      %582 = vadd.xlane.f32.xlu0 %v581
      %v583 = vpop.xlane.xlu0 %582
      %v584 = vsel %vm283, %v550, 0.0
      %585 = vadd.xlane.f32.xlu0 %v584
      %v586 = vpop.xlane.xlu0 %585
      %v587 = vsel %vm283, %v551, 0.0
      %588 = vadd.xlane.f32.xlu0 %v587
      %v589 = vpop.xlane.xlu0 %588
      %v590 = vsel %vm283, %v552, 0.0
      %591 = vadd.xlane.f32.xlu0 %v590
      %v592 = vpop.xlane.xlu0 %591
      %v593 = vsel %vm283, %v553, 0.0
      %594 = vadd.xlane.f32.xlu0 %v593
      %v595 = vpop.xlane.xlu0 %594
      %v596 = vsel %vm283, %v554, 0.0
      %597 = vadd.xlane.f32.xlu0 %v596
      %v598 = vpop.xlane.xlu0 %597
      %v599 = vsel %vm283, %v555, 0.0
      %600 = vadd.xlane.f32.xlu0 %v599
      %v601 = vpop.xlane.xlu0 %600
      %v602 = vsel %vm283, %v556, 0.0
      %603 = vadd.xlane.f32.xlu0 %v602
      %v604 = vpop.xlane.xlu0 %603
      %v605 = vmul.f32 %v495, 0.03125
      %v606 = vmul.f32 %v498, 0.03125
      %v607 = vmul.f32 %v501, 0.03125
      %v608 = vmul.f32 %v504, 0.03125
      %v609 = vmul.f32 %v507, 0.03125
      %v610 = vmul.f32 %v510, 0.03125
      %v611 = vmul.f32 %v513, 0.03125
      %v612 = vmul.f32 %v516, 0.03125
      %v613 = vmul.f32 %v519, 0.03125
      %v614 = vmul.f32 %v522, 0.03125
      %v615 = vmul.f32 %v525, 0.03125
      %v616 = vmul.f32 %v528, 0.03125
      %v617 = vmul.f32 %v531, 0.03125
      %v618 = vmul.f32 %v534, 0.03125
      %v619 = vmul.f32 %v537, 0.03125
      %v620 = vmul.f32 %v540, 0.03125
      %v621 = vmul.f32 %v559, 0.03125
      %v622 = vmul.f32 %v562, 0.03125
      %v623 = vmul.f32 %v565, 0.03125
      %v624 = vmul.f32 %v568, 0.03125
      %v625 = vmul.f32 %v571, 0.03125
      %v626 = vmul.f32 %v574, 0.03125
      %v627 = vmul.f32 %v577, 0.03125
      %v628 = vmul.f32 %v580, 0.03125
      %v629 = vmul.f32 %v583, 0.03125
      %v630 = vmul.f32 %v586, 0.03125
      %v631 = vmul.f32 %v589, 0.03125
      %v632 = vmul.f32 %v592, 0.03125
      %v633 = vmul.f32 %v595, 0.03125
      %v634 = vmul.f32 %v598, 0.03125
      %v635 = vmul.f32 %v601, 0.03125
      %v636 = vmul.f32 %v604, 0.03125
      %v637 = vmul.f32 %v605, %v605
      %v638 = vmul.f32 %v606, %v606
      %v639 = vmul.f32 %v607, %v607
      %v640 = vmul.f32 %v608, %v608
      %v641 = vmul.f32 %v609, %v609
      %v642 = vmul.f32 %v610, %v610
      %v643 = vmul.f32 %v611, %v611
      %v644 = vmul.f32 %v612, %v612
      %v645 = vmul.f32 %v613, %v613
      %v646 = vmul.f32 %v614, %v614
      %v647 = vmul.f32 %v615, %v615
      %v648 = vmul.f32 %v616, %v616
      %v649 = vmul.f32 %v617, %v617
      %v650 = vmul.f32 %v618, %v618
      %v651 = vmul.f32 %v619, %v619
      %v652 = vmul.f32 %v620, %v620
      %v653 = vsub.f32 %v621, %v637
      %v654 = vsub.f32 %v622, %v638
      %v655 = vsub.f32 %v623, %v639
      %v656 = vsub.f32 %v624, %v640
      %v657 = vsub.f32 %v625, %v641
      %v658 = vsub.f32 %v626, %v642
      %v659 = vsub.f32 %v627, %v643
      %v660 = vsub.f32 %v628, %v644
      %v661 = vsub.f32 %v629, %v645
      %v662 = vsub.f32 %v630, %v646
      %v663 = vsub.f32 %v631, %v647
      %v664 = vsub.f32 %v632, %v648
      %v665 = vsub.f32 %v633, %v649
      %v666 = vsub.f32 %v634, %v650
      %v667 = vsub.f32 %v635, %v651
      %v668 = vsub.f32 %v636, %v652
      %v669 = vmax.f32 %v653, 0.0
      %v670 = vmax.f32 %v654, 0.0
      %v671 = vmax.f32 %v655, 0.0
      %v672 = vmax.f32 %v656, 0.0
      %v673 = vmax.f32 %v657, 0.0
      %v674 = vmax.f32 %v658, 0.0
      %v675 = vmax.f32 %v659, 0.0
      %v676 = vmax.f32 %v660, 0.0
      %v677 = vmax.f32 %v661, 0.0
      %v678 = vmax.f32 %v662, 0.0
      %v679 = vmax.f32 %v663, 0.0
      %v680 = vmax.f32 %v664, 0.0
      %v681 = vmax.f32 %v665, 0.0
      %v682 = vmax.f32 %v666, 0.0
      %v683 = vmax.f32 %v667, 0.0
      %v684 = vmax.f32 %v668, 0.0
      %v685 = vsub.f32 %v477, %v605
      %v686 = vsub.f32 %v478, %v606
      %v687 = vsub.f32 %v479, %v607
      %v688 = vsub.f32 %v480, %v608
      %v689 = vsub.f32 %v481, %v609
      %v690 = vsub.f32 %v482, %v610
      %v691 = vsub.f32 %v483, %v611
      %v692 = vsub.f32 %v484, %v612
      %v693 = vsub.f32 %v485, %v613
      %v694 = vsub.f32 %v486, %v614
      %v695 = vsub.f32 %v487, %v615
      %v696 = vsub.f32 %v488, %v616
      %v697 = vsub.f32 %v489, %v617
      %v698 = vsub.f32 %v490, %v618
      %v699 = vsub.f32 %v491, %v619
      %v700 = vsub.f32 %v492, %v620
      %v701 = vadd.f32 %v669, 1e-05
      %v702 = vadd.f32 %v670, 1e-05
      %v703 = vadd.f32 %v671, 1e-05
      %v704 = vadd.f32 %v672, 1e-05
      %v705 = vadd.f32 %v673, 1e-05
      %v706 = vadd.f32 %v674, 1e-05
      %v707 = vadd.f32 %v675, 1e-05
      %v708 = vadd.f32 %v676, 1e-05
      %v709 = vadd.f32 %v677, 1e-05
      %v710 = vadd.f32 %v678, 1e-05
      %v711 = vadd.f32 %v679, 1e-05
      %v712 = vadd.f32 %v680, 1e-05
      %v713 = vadd.f32 %v681, 1e-05
      %v714 = vadd.f32 %v682, 1e-05
      %v715 = vadd.f32 %v683, 1e-05
      %v716 = vadd.f32 %v684, 1e-05
      %v717 = vrsqrt.pop %v701
      %v718 = vrsqrt.pop %v702
      %v719 = vrsqrt.pop %v703
      %v720 = vrsqrt.pop %v704
      %v721 = vrsqrt.pop %v705
      %v722 = vrsqrt.pop %v706
      %v723 = vrsqrt.pop %v707
      %v724 = vrsqrt.pop %v708
      %v725 = vrsqrt.pop %v709
      %v726 = vrsqrt.pop %v710
      %v727 = vrsqrt.pop %v711
      %v728 = vrsqrt.pop %v712
      %v729 = vrsqrt.pop %v713
      %v730 = vrsqrt.pop %v714
      %v731 = vrsqrt.pop %v715
      %v732 = vrsqrt.pop %v716
      %v733 = vmul.f32 %v685, %v717
      %v734 = vmul.f32 %v686, %v718
      %v735 = vmul.f32 %v687, %v719
      %v736 = vmul.f32 %v688, %v720
      %v737 = vmul.f32 %v689, %v721
      %v738 = vmul.f32 %v690, %v722
      %v739 = vmul.f32 %v691, %v723
      %v740 = vmul.f32 %v692, %v724
      %v741 = vmul.f32 %v693, %v725
      %v742 = vmul.f32 %v694, %v726
      %v743 = vmul.f32 %v695, %v727
      %v744 = vmul.f32 %v696, %v728
      %v745 = vmul.f32 %v697, %v729
      %v746 = vmul.f32 %v698, %v730
      %v747 = vmul.f32 %v699, %v731
      %v748 = vmul.f32 %v700, %v732
      %v749 = vlaneseq
      %v750 = vshrl.u32 %v749, 7
      %v751 = vsub.s32 0, %v750
      %v752 = vrot.slane %v277, %v751
      %v753 = vmul.f32 %v733, %v752
      %v754 = vmul.f32 %v734, %v752
      %v755 = vmul.f32 %v735, %v752
      %v756 = vmul.f32 %v736, %v752
      %v757 = vmul.f32 %v737, %v752
      %v758 = vmul.f32 %v738, %v752
      %v759 = vmul.f32 %v739, %v752
      %v760 = vmul.f32 %v740, %v752
      %v761 = vmul.f32 %v741, %v752
      %v762 = vmul.f32 %v742, %v752
      %v763 = vmul.f32 %v743, %v752
      %v764 = vmul.f32 %v744, %v752
      %v765 = vmul.f32 %v745, %v752
      %v766 = vmul.f32 %v746, %v752
      %v767 = vmul.f32 %v747, %v752
      %v768 = vmul.f32 %v748, %v752
      %v769 = vlaneseq
      %v770 = vshrl.u32 %v769, 7
      %v771 = vsub.s32 0, %v770
      %v772 = vrot.slane %v278, %v771
      %v773 = vadd.f32 %v753, %v772
      %v774 = vadd.f32 %v754, %v772
      %v775 = vadd.f32 %v755, %v772
      %v776 = vadd.f32 %v756, %v772
      %v777 = vadd.f32 %v757, %v772
      %v778 = vadd.f32 %v758, %v772
      %v779 = vadd.f32 %v759, %v772
      %v780 = vadd.f32 %v760, %v772
      %v781 = vadd.f32 %v761, %v772
      %v782 = vadd.f32 %v762, %v772
      %v783 = vadd.f32 %v763, %v772
      %v784 = vadd.f32 %v764, %v772
      %v785 = vadd.f32 %v765, %v772
      %v786 = vadd.f32 %v766, %v772
      %v787 = vadd.f32 %v767, %v772
      %v788 = vadd.f32 %v768, %v772
      %s789 = scalar_lea.vmem %s1, 32
      %v790 = vld [vmem:[%s789] sm:$0xff]
      %v791 = vld [vmem:[%s789 + $0x8] sm:$0xff]
      %v792 = vld [vmem:[%s789 + $0x10] sm:$0xff]
      %v793 = vld [vmem:[%s789 + $0x18] sm:$0xff]
      %v794 = vld [vmem:[%s2 + $0x3] sm:$0x1]
      %v795 = vld [vmem:[%s2 + $0x4] sm:$0x1]
      %v796 = vld [vmem:[%s2 + $0x5] sm:$0x1]
      %v797 = vlaneseq
      %v798 = vshrl.u32 %v797, 7
      %v799 = vsub.s32 0, %v798
      %v800 = vrot.slane %v794, %v799
      %v802 = vsel %vm283, %v773, 0
      %v805 = vsel %vm283, %v774, 0
      %v808 = vsel %vm283, %v775, 0
      %v811 = vsel %vm283, %v776, 0
      %v814 = vsel %vm283, %v777, 0
      %v817 = vsel %vm283, %v778, 0
      %v820 = vsel %vm283, %v779, 0
      %v823 = vsel %vm283, %v780, 0
      %v826 = vsel %vm283, %v781, 0
      %v829 = vsel %vm283, %v782, 0
      %v832 = vsel %vm283, %v783, 0
      %v835 = vsel %vm283, %v784, 0
      %v838 = vsel %vm283, %v785, 0
      %v841 = vsel %vm283, %v786, 0
      %v844 = vsel %vm283, %v787, 0
      %v847 = vsel %vm283, %v788, 0
      %849 = vmatprep.subr.mxu0 0.0
      %850 = vmatpush1.msra.mxu0 %v790
      %851 = vmatprep.subr.mxu0 0.0
      %852 = vmatpush1.msra.mxu0 %v791
      %853 = vmatprep.subr.mxu0 0.0
      %854 = vmatpush1.msra.mxu0 %v792
      %855 = vmatprep.subr.mxu0 0.0
      %856 = vmatpush1.msra.mxu0 %v793
      %857 = vmatprep.subr.mxu0 0.0
      %858 = vmatpush1.msra.mxu0 0.0
      %859 = vmatprep.subr.mxu0 0.0
      %860 = vmatpush1.msra.mxu0 0.0
      %861 = vmatprep.subr.mxu0 0.0
      %862 = vmatpush1.msra.mxu0 0.0
      %863 = vmatprep.subr.mxu0 0.0
      %864 = vmatpush1.msra.mxu0 0.0
      %865 = vmatprep.subr.mxu0 0.0
      %866 = vmatpush1.msra.mxu0 0.0
      %867 = vmatprep.subr.mxu0 0.0
      %868 = vmatpush1.msra.mxu0 0.0
      %869 = vmatprep.subr.mxu0 0.0
      %870 = vmatpush1.msra.mxu0 0.0
      %871 = vmatprep.subr.mxu0 0.0
      %872 = vmatpush1.msra.mxu0 0.0
      %873 = vmatprep.subr.mxu0 0.0
      %874 = vmatpush1.msra.mxu0 0.0
      %875 = vmatprep.subr.mxu0 0.0
      %876 = vmatpush1.msra.mxu0 0.0
      %877 = vmatprep.subr.mxu0 0.0
      %878 = vmatpush1.msra.mxu0 0.0
      %879 = vmatprep.subr.mxu0 0.0
      %880 = vmatpush1.msra.mxu0 0.0
      %881 = vmatprep.subr.mxu0 0.0
      %882 = vmatpush1.msra.mxu0 0.0
      %883 = vmatprep.subr.mxu0 0.0
      %884 = vmatpush1.msra.mxu0 0.0
      %885 = vmatprep.subr.mxu0 0.0
      %886 = vmatpush1.msra.mxu0 0.0
      %887 = vmatprep.subr.mxu0 0.0
      %888 = vmatpush1.msra.mxu0 0.0
      %889 = vmatprep.subr.mxu0 0.0
      %890 = vmatpush1.msra.mxu0 0.0
      %891 = vmatprep.subr.mxu0 0.0
      %892 = vmatpush1.msra.mxu0 0.0
      %893 = vmatprep.subr.mxu0 0.0
      %894 = vmatpush1.msra.mxu0 0.0
      %895 = vmatprep.subr.mxu0 0.0
      %896 = vmatpush1.msra.mxu0 0.0
      %897 = vmatprep.subr.mxu0 0.0
      %898 = vmatpush1.msra.mxu0 0.0
      %899 = vmatprep.subr.mxu0 0.0
      %900 = vmatpush1.msra.mxu0 0.0
      %901 = vmatprep.subr.mxu0 0.0
      %902 = vmatpush1.msra.mxu0 0.0
      %903 = vmatprep.subr.mxu0 0.0
      %904 = vmatpush1.msra.mxu0 0.0
      %905 = vmatprep.subr.mxu0 0.0
      %906 = vmatpush1.msra.mxu0 0.0
      %907 = vmatprep.subr.mxu0 0.0
      %908 = vmatpush1.msra.mxu0 0.0
      %909 = vmatprep.subr.mxu0 0.0
      %910 = vmatpush1.msra.mxu0 0.0
      %911 = vmatprep.subr.mxu0 0.0
      %912 = vmatpush1.msra.mxu0 0.0
      %913 = vmatprep.mubr.f32.mxu0 0.0
      %914 = vmatmul.mubr.f32.gmra.mrb[0].mxu0 %v802
      %v915 = vpop.f32.mrb[0].mxu0
      %v916 = vadd.f32 %v800, %v915
      %v917 = vpop.f32.mrb[0].mxu0
      %918 = vmatprep.mubr.f32.mxu0 0.0
      %919 = vmatmul.mubr.f32.gmra.mrb[0].mxu0 %v805
      %v920 = vpop.f32.mrb[0].mxu0
      %v921 = vadd.f32 %v800, %v920
      %v922 = vpop.f32.mrb[0].mxu0
      %923 = vmatprep.mubr.f32.mxu0 0.0
      %924 = vmatmul.mubr.f32.gmra.mrb[0].mxu0 %v808
      %v925 = vpop.f32.mrb[0].mxu0
      %v926 = vadd.f32 %v800, %v925
      %v927 = vpop.f32.mrb[0].mxu0
      %928 = vmatprep.mubr.f32.mxu0 0.0
      %929 = vmatmul.mubr.f32.gmra.mrb[0].mxu0 %v811
      %v930 = vpop.f32.mrb[0].mxu0
      %v931 = vadd.f32 %v800, %v930
      %v932 = vpop.f32.mrb[0].mxu0
      %933 = vmatprep.mubr.f32.mxu0 0.0
      %934 = vmatmul.mubr.f32.gmra.mrb[0].mxu0 %v814
      %v935 = vpop.f32.mrb[0].mxu0
      %v936 = vadd.f32 %v800, %v935
      %v937 = vpop.f32.mrb[0].mxu0
      %938 = vmatprep.mubr.f32.mxu0 0.0
      %939 = vmatmul.mubr.f32.gmra.mrb[0].mxu0 %v817
      %v940 = vpop.f32.mrb[0].mxu0
      %v941 = vadd.f32 %v800, %v940
      %v942 = vpop.f32.mrb[0].mxu0
      %943 = vmatprep.mubr.f32.mxu0 0.0
      %944 = vmatmul.mubr.f32.gmra.mrb[0].mxu0 %v820
      %v945 = vpop.f32.mrb[0].mxu0
      %v946 = vadd.f32 %v800, %v945
      %v947 = vpop.f32.mrb[0].mxu0
      %948 = vmatprep.mubr.f32.mxu0 0.0
      %949 = vmatmul.mubr.f32.gmra.mrb[0].mxu0 %v823
      %v950 = vpop.f32.mrb[0].mxu0
      %v951 = vadd.f32 %v800, %v950
      %v952 = vpop.f32.mrb[0].mxu0
      %953 = vmatprep.mubr.f32.mxu0 0.0
      %954 = vmatmul.mubr.f32.gmra.mrb[0].mxu0 %v826
      %v955 = vpop.f32.mrb[0].mxu0
      %v956 = vadd.f32 %v800, %v955
      %v957 = vpop.f32.mrb[0].mxu0
      %958 = vmatprep.mubr.f32.mxu0 0.0
      %959 = vmatmul.mubr.f32.gmra.mrb[0].mxu0 %v829
      %v960 = vpop.f32.mrb[0].mxu0
      %v961 = vadd.f32 %v800, %v960
      %v962 = vpop.f32.mrb[0].mxu0
      %963 = vmatprep.mubr.f32.mxu0 0.0
      %964 = vmatmul.mubr.f32.gmra.mrb[0].mxu0 %v832
      %v965 = vpop.f32.mrb[0].mxu0
      %v966 = vadd.f32 %v800, %v965
      %v967 = vpop.f32.mrb[0].mxu0
      %968 = vmatprep.mubr.f32.mxu0 0.0
      %969 = vmatmul.mubr.f32.gmra.mrb[0].mxu0 %v835
      %v970 = vpop.f32.mrb[0].mxu0
      %v971 = vadd.f32 %v800, %v970
      %v972 = vpop.f32.mrb[0].mxu0
      %973 = vmatprep.mubr.f32.mxu0 0.0
      %974 = vmatmul.mubr.f32.gmra.mrb[0].mxu0 %v838
      %v975 = vpop.f32.mrb[0].mxu0
      %v976 = vadd.f32 %v800, %v975
      %v977 = vpop.f32.mrb[0].mxu0
      %978 = vmatprep.mubr.f32.mxu0 0.0
      %979 = vmatmul.mubr.f32.gmra.mrb[0].mxu0 %v841
      %v980 = vpop.f32.mrb[0].mxu0
      %v981 = vadd.f32 %v800, %v980
      %v982 = vpop.f32.mrb[0].mxu0
      %983 = vmatprep.mubr.f32.mxu0 0.0
      %984 = vmatmul.mubr.f32.gmra.mrb[0].mxu0 %v844
      %v985 = vpop.f32.mrb[0].mxu0
      %v986 = vadd.f32 %v800, %v985
      %v987 = vpop.f32.mrb[0].mxu0
      %988 = vmatprep.mubr.f32.mxu0 0.0
      %989 = vmatmul.mubr.f32.gmra.mrb[0].mxu0 %v847
      %v990 = vpop.f32.mrb[0].mxu0
      %v991 = vadd.f32 %v800, %v990
      %v992 = vpop.f32.mrb[0].mxu0
      %993 = vdwg.mxu0
      %v994 = vmax.f32 %v916, 0.0
      %v995 = vmax.f32 %v921, 0.0
      %v996 = vmax.f32 %v926, 0.0
      %v997 = vmax.f32 %v931, 0.0
      %v998 = vmax.f32 %v936, 0.0
      %v999 = vmax.f32 %v941, 0.0
      %v1000 = vmax.f32 %v946, 0.0
      %v1001 = vmax.f32 %v951, 0.0
      %v1002 = vmax.f32 %v956, 0.0
      %v1003 = vmax.f32 %v961, 0.0
      %v1004 = vmax.f32 %v966, 0.0
      %v1005 = vmax.f32 %v971, 0.0
      %v1006 = vmax.f32 %v976, 0.0
      %v1007 = vmax.f32 %v981, 0.0
      %v1008 = vmax.f32 %v986, 0.0
      %v1009 = vmax.f32 %v991, 0.0
      %v1010 = vsel %vm283, %v994, 0.0
      %1011 = vadd.xlane.f32.xlu0 %v1010
      %v1012 = vpop.xlane.xlu0 %1011
      %v1013 = vsel %vm283, %v995, 0.0
      %1014 = vadd.xlane.f32.xlu0 %v1013
      %v1015 = vpop.xlane.xlu0 %1014
      %v1016 = vsel %vm283, %v996, 0.0
      %1017 = vadd.xlane.f32.xlu0 %v1016
      %v1018 = vpop.xlane.xlu0 %1017
      %v1019 = vsel %vm283, %v997, 0.0
      %1020 = vadd.xlane.f32.xlu0 %v1019
      %v1021 = vpop.xlane.xlu0 %1020
      %v1022 = vsel %vm283, %v998, 0.0
      %1023 = vadd.xlane.f32.xlu0 %v1022
      %v1024 = vpop.xlane.xlu0 %1023
      %v1025 = vsel %vm283, %v999, 0.0
      %1026 = vadd.xlane.f32.xlu0 %v1025
      %v1027 = vpop.xlane.xlu0 %1026
      %v1028 = vsel %vm283, %v1000, 0.0
      %1029 = vadd.xlane.f32.xlu0 %v1028
      %v1030 = vpop.xlane.xlu0 %1029
      %v1031 = vsel %vm283, %v1001, 0.0
      %1032 = vadd.xlane.f32.xlu0 %v1031
      %v1033 = vpop.xlane.xlu0 %1032
      %v1034 = vsel %vm283, %v1002, 0.0
      %1035 = vadd.xlane.f32.xlu0 %v1034
      %v1036 = vpop.xlane.xlu0 %1035
      %v1037 = vsel %vm283, %v1003, 0.0
      %1038 = vadd.xlane.f32.xlu0 %v1037
      %v1039 = vpop.xlane.xlu0 %1038
      %v1040 = vsel %vm283, %v1004, 0.0
      %1041 = vadd.xlane.f32.xlu0 %v1040
      %v1042 = vpop.xlane.xlu0 %1041
      %v1043 = vsel %vm283, %v1005, 0.0
      %1044 = vadd.xlane.f32.xlu0 %v1043
      %v1045 = vpop.xlane.xlu0 %1044
      %v1046 = vsel %vm283, %v1006, 0.0
      %1047 = vadd.xlane.f32.xlu0 %v1046
      %v1048 = vpop.xlane.xlu0 %1047
      %v1049 = vsel %vm283, %v1007, 0.0
      %1050 = vadd.xlane.f32.xlu0 %v1049
      %v1051 = vpop.xlane.xlu0 %1050
      %v1052 = vsel %vm283, %v1008, 0.0
      %1053 = vadd.xlane.f32.xlu0 %v1052
      %v1054 = vpop.xlane.xlu0 %1053
      %v1055 = vsel %vm283, %v1009, 0.0
      %1056 = vadd.xlane.f32.xlu0 %v1055
      %v1057 = vpop.xlane.xlu0 %1056
      %v1058 = vmul.f32 %v994, %v994
      %v1059 = vmul.f32 %v995, %v995
      %v1060 = vmul.f32 %v996, %v996
      %v1061 = vmul.f32 %v997, %v997
      %v1062 = vmul.f32 %v998, %v998
      %v1063 = vmul.f32 %v999, %v999
      %v1064 = vmul.f32 %v1000, %v1000
      %v1065 = vmul.f32 %v1001, %v1001
      %v1066 = vmul.f32 %v1002, %v1002
      %v1067 = vmul.f32 %v1003, %v1003
      %v1068 = vmul.f32 %v1004, %v1004
      %v1069 = vmul.f32 %v1005, %v1005
      %v1070 = vmul.f32 %v1006, %v1006
      %v1071 = vmul.f32 %v1007, %v1007
      %v1072 = vmul.f32 %v1008, %v1008
      %v1073 = vmul.f32 %v1009, %v1009
      %v1074 = vsel %vm283, %v1058, 0.0
      %1075 = vadd.xlane.f32.xlu0 %v1074
      %v1076 = vpop.xlane.xlu0 %1075
      %v1077 = vsel %vm283, %v1059, 0.0
      %1078 = vadd.xlane.f32.xlu0 %v1077
      %v1079 = vpop.xlane.xlu0 %1078
      %v1080 = vsel %vm283, %v1060, 0.0
      %1081 = vadd.xlane.f32.xlu0 %v1080
      %v1082 = vpop.xlane.xlu0 %1081
      %v1083 = vsel %vm283, %v1061, 0.0
      %1084 = vadd.xlane.f32.xlu0 %v1083
      %v1085 = vpop.xlane.xlu0 %1084
      %v1086 = vsel %vm283, %v1062, 0.0
      %1087 = vadd.xlane.f32.xlu0 %v1086
      %v1088 = vpop.xlane.xlu0 %1087
      %v1089 = vsel %vm283, %v1063, 0.0
      %1090 = vadd.xlane.f32.xlu0 %v1089
      %v1091 = vpop.xlane.xlu0 %1090
      %v1092 = vsel %vm283, %v1064, 0.0
      %1093 = vadd.xlane.f32.xlu0 %v1092
      %v1094 = vpop.xlane.xlu0 %1093
      %v1095 = vsel %vm283, %v1065, 0.0
      %1096 = vadd.xlane.f32.xlu0 %v1095
      %v1097 = vpop.xlane.xlu0 %1096
      %v1098 = vsel %vm283, %v1066, 0.0
      %1099 = vadd.xlane.f32.xlu0 %v1098
      %v1100 = vpop.xlane.xlu0 %1099
      %v1101 = vsel %vm283, %v1067, 0.0
      %1102 = vadd.xlane.f32.xlu0 %v1101
      %v1103 = vpop.xlane.xlu0 %1102
      %v1104 = vsel %vm283, %v1068, 0.0
      %1105 = vadd.xlane.f32.xlu0 %v1104
      %v1106 = vpop.xlane.xlu0 %1105
      %v1107 = vsel %vm283, %v1069, 0.0
      %1108 = vadd.xlane.f32.xlu0 %v1107
      %v1109 = vpop.xlane.xlu0 %1108
      %v1110 = vsel %vm283, %v1070, 0.0
      %1111 = vadd.xlane.f32.xlu0 %v1110
      %v1112 = vpop.xlane.xlu0 %1111
      %v1113 = vsel %vm283, %v1071, 0.0
      %1114 = vadd.xlane.f32.xlu0 %v1113
      %v1115 = vpop.xlane.xlu0 %1114
      %v1116 = vsel %vm283, %v1072, 0.0
      %1117 = vadd.xlane.f32.xlu0 %v1116
      %v1118 = vpop.xlane.xlu0 %1117
      %v1119 = vsel %vm283, %v1073, 0.0
      %1120 = vadd.xlane.f32.xlu0 %v1119
      %v1121 = vpop.xlane.xlu0 %1120
      %v1122 = vmul.f32 %v1012, 0.03125
      %v1123 = vmul.f32 %v1015, 0.03125
      %v1124 = vmul.f32 %v1018, 0.03125
      %v1125 = vmul.f32 %v1021, 0.03125
      %v1126 = vmul.f32 %v1024, 0.03125
      %v1127 = vmul.f32 %v1027, 0.03125
      %v1128 = vmul.f32 %v1030, 0.03125
      %v1129 = vmul.f32 %v1033, 0.03125
      %v1130 = vmul.f32 %v1036, 0.03125
      %v1131 = vmul.f32 %v1039, 0.03125
      %v1132 = vmul.f32 %v1042, 0.03125
      %v1133 = vmul.f32 %v1045, 0.03125
      %v1134 = vmul.f32 %v1048, 0.03125
      %v1135 = vmul.f32 %v1051, 0.03125
      %v1136 = vmul.f32 %v1054, 0.03125
      %v1137 = vmul.f32 %v1057, 0.03125
      %v1138 = vmul.f32 %v1076, 0.03125
      %v1139 = vmul.f32 %v1079, 0.03125
      %v1140 = vmul.f32 %v1082, 0.03125
      %v1141 = vmul.f32 %v1085, 0.03125
      %v1142 = vmul.f32 %v1088, 0.03125
      %v1143 = vmul.f32 %v1091, 0.03125
      %v1144 = vmul.f32 %v1094, 0.03125
      %v1145 = vmul.f32 %v1097, 0.03125
      %v1146 = vmul.f32 %v1100, 0.03125
      %v1147 = vmul.f32 %v1103, 0.03125
      %v1148 = vmul.f32 %v1106, 0.03125
      %v1149 = vmul.f32 %v1109, 0.03125
      %v1150 = vmul.f32 %v1112, 0.03125
      %v1151 = vmul.f32 %v1115, 0.03125
      %v1152 = vmul.f32 %v1118, 0.03125
      %v1153 = vmul.f32 %v1121, 0.03125
      %v1154 = vmul.f32 %v1122, %v1122
      %v1155 = vmul.f32 %v1123, %v1123
      %v1156 = vmul.f32 %v1124, %v1124
      %v1157 = vmul.f32 %v1125, %v1125
      %v1158 = vmul.f32 %v1126, %v1126
      %v1159 = vmul.f32 %v1127, %v1127
      %v1160 = vmul.f32 %v1128, %v1128
      %v1161 = vmul.f32 %v1129, %v1129
      %v1162 = vmul.f32 %v1130, %v1130
      %v1163 = vmul.f32 %v1131, %v1131
      %v1164 = vmul.f32 %v1132, %v1132
      %v1165 = vmul.f32 %v1133, %v1133
      %v1166 = vmul.f32 %v1134, %v1134
      %v1167 = vmul.f32 %v1135, %v1135
      %v1168 = vmul.f32 %v1136, %v1136
      %v1169 = vmul.f32 %v1137, %v1137
      %v1170 = vsub.f32 %v1138, %v1154
      %v1171 = vsub.f32 %v1139, %v1155
      %v1172 = vsub.f32 %v1140, %v1156
      %v1173 = vsub.f32 %v1141, %v1157
      %v1174 = vsub.f32 %v1142, %v1158
      %v1175 = vsub.f32 %v1143, %v1159
      %v1176 = vsub.f32 %v1144, %v1160
      %v1177 = vsub.f32 %v1145, %v1161
      %v1178 = vsub.f32 %v1146, %v1162
      %v1179 = vsub.f32 %v1147, %v1163
      %v1180 = vsub.f32 %v1148, %v1164
      %v1181 = vsub.f32 %v1149, %v1165
      %v1182 = vsub.f32 %v1150, %v1166
      %v1183 = vsub.f32 %v1151, %v1167
      %v1184 = vsub.f32 %v1152, %v1168
      %v1185 = vsub.f32 %v1153, %v1169
      %v1186 = vmax.f32 %v1170, 0.0
      %v1187 = vmax.f32 %v1171, 0.0
      %v1188 = vmax.f32 %v1172, 0.0
      %v1189 = vmax.f32 %v1173, 0.0
      %v1190 = vmax.f32 %v1174, 0.0
      %v1191 = vmax.f32 %v1175, 0.0
      %v1192 = vmax.f32 %v1176, 0.0
      %v1193 = vmax.f32 %v1177, 0.0
      %v1194 = vmax.f32 %v1178, 0.0
      %v1195 = vmax.f32 %v1179, 0.0
      %v1196 = vmax.f32 %v1180, 0.0
      %v1197 = vmax.f32 %v1181, 0.0
      %v1198 = vmax.f32 %v1182, 0.0
      %v1199 = vmax.f32 %v1183, 0.0
      %v1200 = vmax.f32 %v1184, 0.0
      %v1201 = vmax.f32 %v1185, 0.0
      %v1202 = vsub.f32 %v994, %v1122
      %v1203 = vsub.f32 %v995, %v1123
      %v1204 = vsub.f32 %v996, %v1124
      %v1205 = vsub.f32 %v997, %v1125
      %v1206 = vsub.f32 %v998, %v1126
      %v1207 = vsub.f32 %v999, %v1127
      %v1208 = vsub.f32 %v1000, %v1128
      %v1209 = vsub.f32 %v1001, %v1129
      %v1210 = vsub.f32 %v1002, %v1130
      %v1211 = vsub.f32 %v1003, %v1131
      %v1212 = vsub.f32 %v1004, %v1132
      %v1213 = vsub.f32 %v1005, %v1133
      %v1214 = vsub.f32 %v1006, %v1134
      %v1215 = vsub.f32 %v1007, %v1135
      %v1216 = vsub.f32 %v1008, %v1136
      %v1217 = vsub.f32 %v1009, %v1137
      %v1218 = vadd.f32 %v1186, 1e-05
      %v1219 = vadd.f32 %v1187, 1e-05
      %v1220 = vadd.f32 %v1188, 1e-05
      %v1221 = vadd.f32 %v1189, 1e-05
      %v1222 = vadd.f32 %v1190, 1e-05
      %v1223 = vadd.f32 %v1191, 1e-05
      %v1224 = vadd.f32 %v1192, 1e-05
      %v1225 = vadd.f32 %v1193, 1e-05
      %v1226 = vadd.f32 %v1194, 1e-05
      %v1227 = vadd.f32 %v1195, 1e-05
      %v1228 = vadd.f32 %v1196, 1e-05
      %v1229 = vadd.f32 %v1197, 1e-05
      %v1230 = vadd.f32 %v1198, 1e-05
      %v1231 = vadd.f32 %v1199, 1e-05
      %v1232 = vadd.f32 %v1200, 1e-05
      %v1233 = vadd.f32 %v1201, 1e-05
      %v1234 = vrsqrt.pop %v1218
      %v1235 = vrsqrt.pop %v1219
      %v1236 = vrsqrt.pop %v1220
      %v1237 = vrsqrt.pop %v1221
      %v1238 = vrsqrt.pop %v1222
      %v1239 = vrsqrt.pop %v1223
      %v1240 = vrsqrt.pop %v1224
      %v1241 = vrsqrt.pop %v1225
      %v1242 = vrsqrt.pop %v1226
      %v1243 = vrsqrt.pop %v1227
      %v1244 = vrsqrt.pop %v1228
      %v1245 = vrsqrt.pop %v1229
      %v1246 = vrsqrt.pop %v1230
      %v1247 = vrsqrt.pop %v1231
      %v1248 = vrsqrt.pop %v1232
      %v1249 = vrsqrt.pop %v1233
      %v1250 = vmul.f32 %v1202, %v1234
      %v1251 = vmul.f32 %v1203, %v1235
      %v1252 = vmul.f32 %v1204, %v1236
      %v1253 = vmul.f32 %v1205, %v1237
      %v1254 = vmul.f32 %v1206, %v1238
      %v1255 = vmul.f32 %v1207, %v1239
      %v1256 = vmul.f32 %v1208, %v1240
      %v1257 = vmul.f32 %v1209, %v1241
      %v1258 = vmul.f32 %v1210, %v1242
      %v1259 = vmul.f32 %v1211, %v1243
      %v1260 = vmul.f32 %v1212, %v1244
      %v1261 = vmul.f32 %v1213, %v1245
      %v1262 = vmul.f32 %v1214, %v1246
      %v1263 = vmul.f32 %v1215, %v1247
      %v1264 = vmul.f32 %v1216, %v1248
      %v1265 = vmul.f32 %v1217, %v1249
      %v1266 = vlaneseq
      %v1267 = vshrl.u32 %v1266, 7
      %v1268 = vsub.s32 0, %v1267
      %v1269 = vrot.slane %v795, %v1268
      %v1270 = vmul.f32 %v1250, %v1269
      %v1271 = vmul.f32 %v1251, %v1269
      %v1272 = vmul.f32 %v1252, %v1269
      %v1273 = vmul.f32 %v1253, %v1269
      %v1274 = vmul.f32 %v1254, %v1269
      %v1275 = vmul.f32 %v1255, %v1269
      %v1276 = vmul.f32 %v1256, %v1269
      %v1277 = vmul.f32 %v1257, %v1269
      %v1278 = vmul.f32 %v1258, %v1269
      %v1279 = vmul.f32 %v1259, %v1269
      %v1280 = vmul.f32 %v1260, %v1269
      %v1281 = vmul.f32 %v1261, %v1269
      %v1282 = vmul.f32 %v1262, %v1269
      %v1283 = vmul.f32 %v1263, %v1269
      %v1284 = vmul.f32 %v1264, %v1269
      %v1285 = vmul.f32 %v1265, %v1269
      %v1286 = vlaneseq
      %v1287 = vshrl.u32 %v1286, 7
      %v1288 = vsub.s32 0, %v1287
      %v1289 = vrot.slane %v796, %v1288
      %v1290 = vadd.f32 %v1270, %v1289
      %v1291 = vadd.f32 %v1271, %v1289
      %v1292 = vadd.f32 %v1272, %v1289
      %v1293 = vadd.f32 %v1273, %v1289
      %v1294 = vadd.f32 %v1274, %v1289
      %v1295 = vadd.f32 %v1275, %v1289
      %v1296 = vadd.f32 %v1276, %v1289
      %v1297 = vadd.f32 %v1277, %v1289
      %v1298 = vadd.f32 %v1278, %v1289
      %v1299 = vadd.f32 %v1279, %v1289
      %v1300 = vadd.f32 %v1280, %v1289
      %v1301 = vadd.f32 %v1281, %v1289
      %v1302 = vadd.f32 %v1282, %v1289
      %v1303 = vadd.f32 %v1283, %v1289
      %v1304 = vadd.f32 %v1284, %v1289
      %v1305 = vadd.f32 %v1285, %v1289
      %v1306 = vld [vmem:[%s3] sm:$0xff]
      %v1307 = vld [vmem:[%s3 + $0x8] sm:$0xff]
      %v1308 = vld [vmem:[%s3 + $0x10] sm:$0xff]
      %v1309 = vld [vmem:[%s3 + $0x18] sm:$0xff]
      %v1310 = vlaneseq
      %v1311 = vshrl.u32 %v1310, 7
      %v1312 = vsub.s32 0, %v1311
      %v1313 = vrot.slane %v271, %v1312
      %v1315 = vsel %vm283, %v1290, 0
      %v1318 = vsel %vm283, %v1291, 0
      %v1321 = vsel %vm283, %v1292, 0
      %v1324 = vsel %vm283, %v1293, 0
      %v1327 = vsel %vm283, %v1294, 0
      %v1330 = vsel %vm283, %v1295, 0
      %v1333 = vsel %vm283, %v1296, 0
      %v1336 = vsel %vm283, %v1297, 0
      %v1339 = vsel %vm283, %v1298, 0
      %v1342 = vsel %vm283, %v1299, 0
      %v1345 = vsel %vm283, %v1300, 0
      %v1348 = vsel %vm283, %v1301, 0
      %v1351 = vsel %vm283, %v1302, 0
      %v1354 = vsel %vm283, %v1303, 0
      %v1357 = vsel %vm283, %v1304, 0
      %v1360 = vsel %vm283, %v1305, 0
      %1362 = vmatprep.subr.mxu0 0.0
      %1363 = vmatpush1.msra.mxu0 %v1306
      %1364 = vmatprep.subr.mxu0 0.0
      %1365 = vmatpush1.msra.mxu0 %v1307
      %1366 = vmatprep.subr.mxu0 0.0
      %1367 = vmatpush1.msra.mxu0 %v1308
      %1368 = vmatprep.subr.mxu0 0.0
      %1369 = vmatpush1.msra.mxu0 %v1309
      %1370 = vmatprep.subr.mxu0 0.0
      %1371 = vmatpush1.msra.mxu0 0.0
      %1372 = vmatprep.subr.mxu0 0.0
      %1373 = vmatpush1.msra.mxu0 0.0
      %1374 = vmatprep.subr.mxu0 0.0
      %1375 = vmatpush1.msra.mxu0 0.0
      %1376 = vmatprep.subr.mxu0 0.0
      %1377 = vmatpush1.msra.mxu0 0.0
      %1378 = vmatprep.subr.mxu0 0.0
      %1379 = vmatpush1.msra.mxu0 0.0
      %1380 = vmatprep.subr.mxu0 0.0
      %1381 = vmatpush1.msra.mxu0 0.0
      %1382 = vmatprep.subr.mxu0 0.0
      %1383 = vmatpush1.msra.mxu0 0.0
      %1384 = vmatprep.subr.mxu0 0.0
      %1385 = vmatpush1.msra.mxu0 0.0
      %1386 = vmatprep.subr.mxu0 0.0
      %1387 = vmatpush1.msra.mxu0 0.0
      %1388 = vmatprep.subr.mxu0 0.0
      %1389 = vmatpush1.msra.mxu0 0.0
      %1390 = vmatprep.subr.mxu0 0.0
      %1391 = vmatpush1.msra.mxu0 0.0
      %1392 = vmatprep.subr.mxu0 0.0
      %1393 = vmatpush1.msra.mxu0 0.0
      %1394 = vmatprep.subr.mxu0 0.0
      %1395 = vmatpush1.msra.mxu0 0.0
      %1396 = vmatprep.subr.mxu0 0.0
      %1397 = vmatpush1.msra.mxu0 0.0
      %1398 = vmatprep.subr.mxu0 0.0
      %1399 = vmatpush1.msra.mxu0 0.0
      %1400 = vmatprep.subr.mxu0 0.0
      %1401 = vmatpush1.msra.mxu0 0.0
      %1402 = vmatprep.subr.mxu0 0.0
      %1403 = vmatpush1.msra.mxu0 0.0
      %1404 = vmatprep.subr.mxu0 0.0
      %1405 = vmatpush1.msra.mxu0 0.0
      %1406 = vmatprep.subr.mxu0 0.0
      %1407 = vmatpush1.msra.mxu0 0.0
      %1408 = vmatprep.subr.mxu0 0.0
      %1409 = vmatpush1.msra.mxu0 0.0
      %1410 = vmatprep.subr.mxu0 0.0
      %1411 = vmatpush1.msra.mxu0 0.0
      %1412 = vmatprep.subr.mxu0 0.0
      %1413 = vmatpush1.msra.mxu0 0.0
      %1414 = vmatprep.subr.mxu0 0.0
      %1415 = vmatpush1.msra.mxu0 0.0
      %1416 = vmatprep.subr.mxu0 0.0
      %1417 = vmatpush1.msra.mxu0 0.0
      %1418 = vmatprep.subr.mxu0 0.0
      %1419 = vmatpush1.msra.mxu0 0.0
      %1420 = vmatprep.subr.mxu0 0.0
      %1421 = vmatpush1.msra.mxu0 0.0
      %1422 = vmatprep.subr.mxu0 0.0
      %1423 = vmatpush1.msra.mxu0 0.0
      %1424 = vmatprep.subr.mxu0 0.0
      %1425 = vmatpush1.msra.mxu0 0.0
      %1426 = vmatprep.mubr.f32.mxu0 0.0
      %1427 = vmatmul.mubr.f32.gmra.mrb[0].mxu0 %v1315
      %v1428 = vpop.f32.mrb[0].mxu0
      %v1429 = vadd.f32 %v1313, %v1428
      %v1430 = vpop.f32.mrb[0].mxu0
      %1431 = vmatprep.mubr.f32.mxu0 0.0
      %1432 = vmatmul.mubr.f32.gmra.mrb[0].mxu0 %v1318
      %v1433 = vpop.f32.mrb[0].mxu0
      %v1434 = vadd.f32 %v1313, %v1433
      %v1435 = vpop.f32.mrb[0].mxu0
      %1436 = vmatprep.mubr.f32.mxu0 0.0
      %1437 = vmatmul.mubr.f32.gmra.mrb[0].mxu0 %v1321
      %v1438 = vpop.f32.mrb[0].mxu0
      %v1439 = vadd.f32 %v1313, %v1438
      %v1440 = vpop.f32.mrb[0].mxu0
      %1441 = vmatprep.mubr.f32.mxu0 0.0
      %1442 = vmatmul.mubr.f32.gmra.mrb[0].mxu0 %v1324
      %v1443 = vpop.f32.mrb[0].mxu0
      %v1444 = vadd.f32 %v1313, %v1443
      %v1445 = vpop.f32.mrb[0].mxu0
      %1446 = vmatprep.mubr.f32.mxu0 0.0
      %1447 = vmatmul.mubr.f32.gmra.mrb[0].mxu0 %v1327
      %v1448 = vpop.f32.mrb[0].mxu0
      %v1449 = vadd.f32 %v1313, %v1448
      %v1450 = vpop.f32.mrb[0].mxu0
      %1451 = vmatprep.mubr.f32.mxu0 0.0
      %1452 = vmatmul.mubr.f32.gmra.mrb[0].mxu0 %v1330
      %v1453 = vpop.f32.mrb[0].mxu0
      %v1454 = vadd.f32 %v1313, %v1453
      %v1455 = vpop.f32.mrb[0].mxu0
      %1456 = vmatprep.mubr.f32.mxu0 0.0
      %1457 = vmatmul.mubr.f32.gmra.mrb[0].mxu0 %v1333
      %v1458 = vpop.f32.mrb[0].mxu0
      %v1459 = vadd.f32 %v1313, %v1458
      %v1460 = vpop.f32.mrb[0].mxu0
      %1461 = vmatprep.mubr.f32.mxu0 0.0
      %1462 = vmatmul.mubr.f32.gmra.mrb[0].mxu0 %v1336
      %v1463 = vpop.f32.mrb[0].mxu0
      %v1464 = vadd.f32 %v1313, %v1463
      %v1465 = vpop.f32.mrb[0].mxu0
      %1466 = vmatprep.mubr.f32.mxu0 0.0
      %1467 = vmatmul.mubr.f32.gmra.mrb[0].mxu0 %v1339
      %v1468 = vpop.f32.mrb[0].mxu0
      %v1469 = vadd.f32 %v1313, %v1468
      %v1470 = vpop.f32.mrb[0].mxu0
      %1471 = vmatprep.mubr.f32.mxu0 0.0
      %1472 = vmatmul.mubr.f32.gmra.mrb[0].mxu0 %v1342
      %v1473 = vpop.f32.mrb[0].mxu0
      %v1474 = vadd.f32 %v1313, %v1473
      %v1475 = vpop.f32.mrb[0].mxu0
      %1476 = vmatprep.mubr.f32.mxu0 0.0
      %1477 = vmatmul.mubr.f32.gmra.mrb[0].mxu0 %v1345
      %v1478 = vpop.f32.mrb[0].mxu0
      %v1479 = vadd.f32 %v1313, %v1478
      %v1480 = vpop.f32.mrb[0].mxu0
      %1481 = vmatprep.mubr.f32.mxu0 0.0
      %1482 = vmatmul.mubr.f32.gmra.mrb[0].mxu0 %v1348
      %v1483 = vpop.f32.mrb[0].mxu0
      %v1484 = vadd.f32 %v1313, %v1483
      %v1485 = vpop.f32.mrb[0].mxu0
      %1486 = vmatprep.mubr.f32.mxu0 0.0
      %1487 = vmatmul.mubr.f32.gmra.mrb[0].mxu0 %v1351
      %v1488 = vpop.f32.mrb[0].mxu0
      %v1489 = vadd.f32 %v1313, %v1488
      %v1490 = vpop.f32.mrb[0].mxu0
      %1491 = vmatprep.mubr.f32.mxu0 0.0
      %1492 = vmatmul.mubr.f32.gmra.mrb[0].mxu0 %v1354
      %v1493 = vpop.f32.mrb[0].mxu0
      %v1494 = vadd.f32 %v1313, %v1493
      %v1495 = vpop.f32.mrb[0].mxu0
      %1496 = vmatprep.mubr.f32.mxu0 0.0
      %1497 = vmatmul.mubr.f32.gmra.mrb[0].mxu0 %v1357
      %v1498 = vpop.f32.mrb[0].mxu0
      %v1499 = vadd.f32 %v1313, %v1498
      %v1500 = vpop.f32.mrb[0].mxu0
      %1501 = vmatprep.mubr.f32.mxu0 0.0
      %1502 = vmatmul.mubr.f32.gmra.mrb[0].mxu0 %v1360
      %v1503 = vpop.f32.mrb[0].mxu0
      %v1504 = vadd.f32 %v1313, %v1503
      %v1505 = vpop.f32.mrb[0].mxu0
      %1506 = vdwg.mxu0
      %v1507 = vmax.f32 %v1429, 0.0
      %v1508 = vmax.f32 %v1434, 0.0
      %v1509 = vmax.f32 %v1439, 0.0
      %v1510 = vmax.f32 %v1444, 0.0
      %v1511 = vmax.f32 %v1449, 0.0
      %v1512 = vmax.f32 %v1454, 0.0
      %v1513 = vmax.f32 %v1459, 0.0
      %v1514 = vmax.f32 %v1464, 0.0
      %v1515 = vmax.f32 %v1469, 0.0
      %v1516 = vmax.f32 %v1474, 0.0
      %v1517 = vmax.f32 %v1479, 0.0
      %v1518 = vmax.f32 %v1484, 0.0
      %v1519 = vmax.f32 %v1489, 0.0
      %v1520 = vmax.f32 %v1494, 0.0
      %v1521 = vmax.f32 %v1499, 0.0
      %v1522 = vmax.f32 %v1504, 0.0
      %v1523 = vld [vmem:[%s4] sm:$0xff]
      %v1524 = vld [vmem:[%s4 + $0x8] sm:$0xff]
      %v1525 = vlaneseq
      %v1526 = vshrl.u32 %v1525, 7
      %v1527 = vsub.s32 1, %v1526
      %v1528 = vrot.slane %v271, %v1527
      %vm1529 = vcmask 130048
      %v1531 = vsel %vm1529, %v1507, 0
      %v1534 = vsel %vm1529, %v1508, 0
      %v1537 = vsel %vm1529, %v1509, 0
      %v1540 = vsel %vm1529, %v1510, 0
      %v1543 = vsel %vm1529, %v1511, 0
      %v1546 = vsel %vm1529, %v1512, 0
      %v1549 = vsel %vm1529, %v1513, 0
      %v1552 = vsel %vm1529, %v1514, 0
      %v1555 = vsel %vm1529, %v1515, 0
      %v1558 = vsel %vm1529, %v1516, 0
      %v1561 = vsel %vm1529, %v1517, 0
      %v1564 = vsel %vm1529, %v1518, 0
      %v1567 = vsel %vm1529, %v1519, 0
      %v1570 = vsel %vm1529, %v1520, 0
      %v1573 = vsel %vm1529, %v1521, 0
      %v1576 = vsel %vm1529, %v1522, 0
      %1578 = vmatprep.subr.mxu0 0.0
      %1579 = vmatpush1.msra.mxu0 %v1523
      %1580 = vmatprep.subr.mxu0 0.0
      %1581 = vmatpush1.msra.mxu0 %v1524
      %1582 = vmatprep.subr.mxu0 0.0
      %1583 = vmatpush1.msra.mxu0 0.0
      %1584 = vmatprep.subr.mxu0 0.0
      %1585 = vmatpush1.msra.mxu0 0.0
      %1586 = vmatprep.subr.mxu0 0.0
      %1587 = vmatpush1.msra.mxu0 0.0
      %1588 = vmatprep.subr.mxu0 0.0
      %1589 = vmatpush1.msra.mxu0 0.0
      %1590 = vmatprep.subr.mxu0 0.0
      %1591 = vmatpush1.msra.mxu0 0.0
      %1592 = vmatprep.subr.mxu0 0.0
      %1593 = vmatpush1.msra.mxu0 0.0
      %1594 = vmatprep.subr.mxu0 0.0
      %1595 = vmatpush1.msra.mxu0 0.0
      %1596 = vmatprep.subr.mxu0 0.0
      %1597 = vmatpush1.msra.mxu0 0.0
      %1598 = vmatprep.subr.mxu0 0.0
      %1599 = vmatpush1.msra.mxu0 0.0
      %1600 = vmatprep.subr.mxu0 0.0
      %1601 = vmatpush1.msra.mxu0 0.0
      %1602 = vmatprep.subr.mxu0 0.0
      %1603 = vmatpush1.msra.mxu0 0.0
      %1604 = vmatprep.subr.mxu0 0.0
      %1605 = vmatpush1.msra.mxu0 0.0
      %1606 = vmatprep.subr.mxu0 0.0
      %1607 = vmatpush1.msra.mxu0 0.0
      %1608 = vmatprep.subr.mxu0 0.0
      %1609 = vmatpush1.msra.mxu0 0.0
      %1610 = vmatprep.subr.mxu0 0.0
      %1611 = vmatpush1.msra.mxu0 0.0
      %1612 = vmatprep.subr.mxu0 0.0
      %1613 = vmatpush1.msra.mxu0 0.0
      %1614 = vmatprep.subr.mxu0 0.0
      %1615 = vmatpush1.msra.mxu0 0.0
      %1616 = vmatprep.subr.mxu0 0.0
      %1617 = vmatpush1.msra.mxu0 0.0
      %1618 = vmatprep.subr.mxu0 0.0
      %1619 = vmatpush1.msra.mxu0 0.0
      %1620 = vmatprep.subr.mxu0 0.0
      %1621 = vmatpush1.msra.mxu0 0.0
      %1622 = vmatprep.subr.mxu0 0.0
      %1623 = vmatpush1.msra.mxu0 0.0
      %1624 = vmatprep.subr.mxu0 0.0
      %1625 = vmatpush1.msra.mxu0 0.0
      %1626 = vmatprep.subr.mxu0 0.0
      %1627 = vmatpush1.msra.mxu0 0.0
      %1628 = vmatprep.subr.mxu0 0.0
      %1629 = vmatpush1.msra.mxu0 0.0
      %1630 = vmatprep.subr.mxu0 0.0
      %1631 = vmatpush1.msra.mxu0 0.0
      %1632 = vmatprep.subr.mxu0 0.0
      %1633 = vmatpush1.msra.mxu0 0.0
      %1634 = vmatprep.subr.mxu0 0.0
      %1635 = vmatpush1.msra.mxu0 0.0
      %1636 = vmatprep.subr.mxu0 0.0
      %1637 = vmatpush1.msra.mxu0 0.0
      %1638 = vmatprep.subr.mxu0 0.0
      %1639 = vmatpush1.msra.mxu0 0.0
      %1640 = vmatprep.subr.mxu0 0.0
      %1641 = vmatpush1.msra.mxu0 0.0
      %1642 = vmatprep.mubr.f32.mxu0 0.0
      %1643 = vmatmul.mubr.f32.gmra.mrb[0].mxu0 %v1531
      %v1644 = vpop.f32.mrb[0].mxu0
      %v1645 = vadd.f32 %v1528, %v1644
      %v1646 = vpop.f32.mrb[0].mxu0
      %1647 = vmatprep.mubr.f32.mxu0 0.0
      %1648 = vmatmul.mubr.f32.gmra.mrb[0].mxu0 %v1534
      %v1649 = vpop.f32.mrb[0].mxu0
      %v1650 = vadd.f32 %v1528, %v1649
      %v1651 = vpop.f32.mrb[0].mxu0
      %1652 = vmatprep.mubr.f32.mxu0 0.0
      %1653 = vmatmul.mubr.f32.gmra.mrb[0].mxu0 %v1537
      %v1654 = vpop.f32.mrb[0].mxu0
      %v1655 = vadd.f32 %v1528, %v1654
      %v1656 = vpop.f32.mrb[0].mxu0
      %1657 = vmatprep.mubr.f32.mxu0 0.0
      %1658 = vmatmul.mubr.f32.gmra.mrb[0].mxu0 %v1540
      %v1659 = vpop.f32.mrb[0].mxu0
      %v1660 = vadd.f32 %v1528, %v1659
      %v1661 = vpop.f32.mrb[0].mxu0
      %1662 = vmatprep.mubr.f32.mxu0 0.0
      %1663 = vmatmul.mubr.f32.gmra.mrb[0].mxu0 %v1543
      %v1664 = vpop.f32.mrb[0].mxu0
      %v1665 = vadd.f32 %v1528, %v1664
      %v1666 = vpop.f32.mrb[0].mxu0
      %1667 = vmatprep.mubr.f32.mxu0 0.0
      %1668 = vmatmul.mubr.f32.gmra.mrb[0].mxu0 %v1546
      %v1669 = vpop.f32.mrb[0].mxu0
      %v1670 = vadd.f32 %v1528, %v1669
      %v1671 = vpop.f32.mrb[0].mxu0
      %1672 = vmatprep.mubr.f32.mxu0 0.0
      %1673 = vmatmul.mubr.f32.gmra.mrb[0].mxu0 %v1549
      %v1674 = vpop.f32.mrb[0].mxu0
      %v1675 = vadd.f32 %v1528, %v1674
      %v1676 = vpop.f32.mrb[0].mxu0
      %1677 = vmatprep.mubr.f32.mxu0 0.0
      %1678 = vmatmul.mubr.f32.gmra.mrb[0].mxu0 %v1552
      %v1679 = vpop.f32.mrb[0].mxu0
      %v1680 = vadd.f32 %v1528, %v1679
      %v1681 = vpop.f32.mrb[0].mxu0
      %1682 = vmatprep.mubr.f32.mxu0 0.0
      %1683 = vmatmul.mubr.f32.gmra.mrb[0].mxu0 %v1555
      %v1684 = vpop.f32.mrb[0].mxu0
      %v1685 = vadd.f32 %v1528, %v1684
      %v1686 = vpop.f32.mrb[0].mxu0
      %1687 = vmatprep.mubr.f32.mxu0 0.0
      %1688 = vmatmul.mubr.f32.gmra.mrb[0].mxu0 %v1558
      %v1689 = vpop.f32.mrb[0].mxu0
      %v1690 = vadd.f32 %v1528, %v1689
      %v1691 = vpop.f32.mrb[0].mxu0
      %1692 = vmatprep.mubr.f32.mxu0 0.0
      %1693 = vmatmul.mubr.f32.gmra.mrb[0].mxu0 %v1561
      %v1694 = vpop.f32.mrb[0].mxu0
      %v1695 = vadd.f32 %v1528, %v1694
      %v1696 = vpop.f32.mrb[0].mxu0
      %1697 = vmatprep.mubr.f32.mxu0 0.0
      %1698 = vmatmul.mubr.f32.gmra.mrb[0].mxu0 %v1564
      %v1699 = vpop.f32.mrb[0].mxu0
      %v1700 = vadd.f32 %v1528, %v1699
      %v1701 = vpop.f32.mrb[0].mxu0
      %1702 = vmatprep.mubr.f32.mxu0 0.0
      %1703 = vmatmul.mubr.f32.gmra.mrb[0].mxu0 %v1567
      %v1704 = vpop.f32.mrb[0].mxu0
      %v1705 = vadd.f32 %v1528, %v1704
      %v1706 = vpop.f32.mrb[0].mxu0
      %1707 = vmatprep.mubr.f32.mxu0 0.0
      %1708 = vmatmul.mubr.f32.gmra.mrb[0].mxu0 %v1570
      %v1709 = vpop.f32.mrb[0].mxu0
      %v1710 = vadd.f32 %v1528, %v1709
      %v1711 = vpop.f32.mrb[0].mxu0
      %1712 = vmatprep.mubr.f32.mxu0 0.0
      %1713 = vmatmul.mubr.f32.gmra.mrb[0].mxu0 %v1573
      %v1714 = vpop.f32.mrb[0].mxu0
      %v1715 = vadd.f32 %v1528, %v1714
      %v1716 = vpop.f32.mrb[0].mxu0
      %1717 = vmatprep.mubr.f32.mxu0 0.0
      %1718 = vmatmul.mubr.f32.gmra.mrb[0].mxu0 %v1576
      %v1719 = vpop.f32.mrb[0].mxu0
      %v1720 = vadd.f32 %v1528, %v1719
      %v1721 = vpop.f32.mrb[0].mxu0
      %1722 = vdwg.mxu0
      %v1723 = vlaneseq
      %v1724 = vand.u32 %v1723, 127
      %vm1725 = vcmp.lt.s32.totalorder %v1724, 16
      %vm1726 = vcmp.gt.f32.partialorder %v1645, 20.0
      %vm1727 = vcmp.gt.f32.partialorder %v1650, 20.0
      %vm1728 = vcmp.gt.f32.partialorder %v1655, 20.0
      %vm1729 = vcmp.gt.f32.partialorder %v1660, 20.0
      %vm1730 = vcmp.gt.f32.partialorder %v1665, 20.0
      %vm1731 = vcmp.gt.f32.partialorder %v1670, 20.0
      %vm1732 = vcmp.gt.f32.partialorder %v1675, 20.0
      %vm1733 = vcmp.gt.f32.partialorder %v1680, 20.0
      %vm1734 = vcmp.gt.f32.partialorder %v1685, 20.0
      %vm1735 = vcmp.gt.f32.partialorder %v1690, 20.0
      %vm1736 = vcmp.gt.f32.partialorder %v1695, 20.0
      %vm1737 = vcmp.gt.f32.partialorder %v1700, 20.0
      %vm1738 = vcmp.gt.f32.partialorder %v1705, 20.0
      %vm1739 = vcmp.gt.f32.partialorder %v1710, 20.0
      %vm1740 = vcmp.gt.f32.partialorder %v1715, 20.0
      %vm1741 = vcmp.gt.f32.partialorder %v1720, 20.0
      %v1742 = vmin.f32 %v1645, 20.0
      %v1743 = vmin.f32 %v1650, 20.0
      %v1744 = vmin.f32 %v1655, 20.0
      %v1745 = vmin.f32 %v1660, 20.0
      %v1746 = vmin.f32 %v1665, 20.0
      %v1747 = vmin.f32 %v1670, 20.0
      %v1748 = vmin.f32 %v1675, 20.0
      %v1749 = vmin.f32 %v1680, 20.0
      %v1750 = vmin.f32 %v1685, 20.0
      %v1751 = vmin.f32 %v1690, 20.0
      %v1752 = vmin.f32 %v1695, 20.0
      %v1753 = vmin.f32 %v1700, 20.0
      %v1754 = vmin.f32 %v1705, 20.0
      %v1755 = vmin.f32 %v1710, 20.0
      %v1756 = vmin.f32 %v1715, 20.0
      %v1757 = vmin.f32 %v1720, 20.0
      %v1758 = vmul.f32 %v1742, 1.442695
      %v1759 = vpow.pop %v1758
      %v1760 = vmul.f32 %v1743, 1.442695
      %v1761 = vpow.pop %v1760
      %v1762 = vmul.f32 %v1744, 1.442695
      %v1763 = vpow.pop %v1762
      %v1764 = vmul.f32 %v1745, 1.442695
      %v1765 = vpow.pop %v1764
      %v1766 = vmul.f32 %v1746, 1.442695
      %v1767 = vpow.pop %v1766
      %v1768 = vmul.f32 %v1747, 1.442695
      %v1769 = vpow.pop %v1768
      %v1770 = vmul.f32 %v1748, 1.442695
      %v1771 = vpow.pop %v1770
      %v1772 = vmul.f32 %v1749, 1.442695
      %v1773 = vpow.pop %v1772
      %v1774 = vmul.f32 %v1750, 1.442695
      %v1775 = vpow.pop %v1774
      %v1776 = vmul.f32 %v1751, 1.442695
      %v1777 = vpow.pop %v1776
      %v1778 = vmul.f32 %v1752, 1.442695
      %v1779 = vpow.pop %v1778
      %v1780 = vmul.f32 %v1753, 1.442695
      %v1781 = vpow.pop %v1780
      %v1782 = vmul.f32 %v1754, 1.442695
      %v1783 = vpow.pop %v1782
      %v1784 = vmul.f32 %v1755, 1.442695
      %v1785 = vpow.pop %v1784
      %v1786 = vmul.f32 %v1756, 1.442695
      %v1787 = vpow.pop %v1786
      %v1788 = vmul.f32 %v1757, 1.442695
      %v1789 = vpow.pop %v1788
      %v1790 = vadd.f32 %v1759, 1.0
      %v1791 = vlog2.pop %v1790
      %v1792 = vmul.f32 %v1791, 0.6931472
      %v1793 = vmul.f32 -0.5, %v1759
      %v1794 = vadd.f32 %v1793, 1.0
      %v1795 = vmul.f32 %v1794, %v1759
      %v1796 = vand.u32 2147483647, %v1759
      %vm1797 = vcmp.lt.f32.partialorder %v1796, 0.0004427343
      %v1798 = vsel %vm1797, %v1795, %v1792
      %v1799 = vadd.f32 %v1761, 1.0
      %v1800 = vlog2.pop %v1799
      %v1801 = vmul.f32 %v1800, 0.6931472
      %v1802 = vmul.f32 -0.5, %v1761
      %v1803 = vadd.f32 %v1802, 1.0
      %v1804 = vmul.f32 %v1803, %v1761
      %v1805 = vand.u32 2147483647, %v1761
      %vm1806 = vcmp.lt.f32.partialorder %v1805, 0.0004427343
      %v1807 = vsel %vm1806, %v1804, %v1801
      %v1808 = vadd.f32 %v1763, 1.0
      %v1809 = vlog2.pop %v1808
      %v1810 = vmul.f32 %v1809, 0.6931472
      %v1811 = vmul.f32 -0.5, %v1763
      %v1812 = vadd.f32 %v1811, 1.0
      %v1813 = vmul.f32 %v1812, %v1763
      %v1814 = vand.u32 2147483647, %v1763
      %vm1815 = vcmp.lt.f32.partialorder %v1814, 0.0004427343
      %v1816 = vsel %vm1815, %v1813, %v1810
      %v1817 = vadd.f32 %v1765, 1.0
      %v1818 = vlog2.pop %v1817
      %v1819 = vmul.f32 %v1818, 0.6931472
      %v1820 = vmul.f32 -0.5, %v1765
      %v1821 = vadd.f32 %v1820, 1.0
      %v1822 = vmul.f32 %v1821, %v1765
      %v1823 = vand.u32 2147483647, %v1765
      %vm1824 = vcmp.lt.f32.partialorder %v1823, 0.0004427343
      %v1825 = vsel %vm1824, %v1822, %v1819
      %v1826 = vadd.f32 %v1767, 1.0
      %v1827 = vlog2.pop %v1826
      %v1828 = vmul.f32 %v1827, 0.6931472
      %v1829 = vmul.f32 -0.5, %v1767
      %v1830 = vadd.f32 %v1829, 1.0
      %v1831 = vmul.f32 %v1830, %v1767
      %v1832 = vand.u32 2147483647, %v1767
      %vm1833 = vcmp.lt.f32.partialorder %v1832, 0.0004427343
      %v1834 = vsel %vm1833, %v1831, %v1828
      %v1835 = vadd.f32 %v1769, 1.0
      %v1836 = vlog2.pop %v1835
      %v1837 = vmul.f32 %v1836, 0.6931472
      %v1838 = vmul.f32 -0.5, %v1769
      %v1839 = vadd.f32 %v1838, 1.0
      %v1840 = vmul.f32 %v1839, %v1769
      %v1841 = vand.u32 2147483647, %v1769
      %vm1842 = vcmp.lt.f32.partialorder %v1841, 0.0004427343
      %v1843 = vsel %vm1842, %v1840, %v1837
      %v1844 = vadd.f32 %v1771, 1.0
      %v1845 = vlog2.pop %v1844
      %v1846 = vmul.f32 %v1845, 0.6931472
      %v1847 = vmul.f32 -0.5, %v1771
      %v1848 = vadd.f32 %v1847, 1.0
      %v1849 = vmul.f32 %v1848, %v1771
      %v1850 = vand.u32 2147483647, %v1771
      %vm1851 = vcmp.lt.f32.partialorder %v1850, 0.0004427343
      %v1852 = vsel %vm1851, %v1849, %v1846
      %v1853 = vadd.f32 %v1773, 1.0
      %v1854 = vlog2.pop %v1853
      %v1855 = vmul.f32 %v1854, 0.6931472
      %v1856 = vmul.f32 -0.5, %v1773
      %v1857 = vadd.f32 %v1856, 1.0
      %v1858 = vmul.f32 %v1857, %v1773
      %v1859 = vand.u32 2147483647, %v1773
      %vm1860 = vcmp.lt.f32.partialorder %v1859, 0.0004427343
      %v1861 = vsel %vm1860, %v1858, %v1855
      %v1862 = vadd.f32 %v1775, 1.0
      %v1863 = vlog2.pop %v1862
      %v1864 = vmul.f32 %v1863, 0.6931472
      %v1865 = vmul.f32 -0.5, %v1775
      %v1866 = vadd.f32 %v1865, 1.0
      %v1867 = vmul.f32 %v1866, %v1775
      %v1868 = vand.u32 2147483647, %v1775
      %vm1869 = vcmp.lt.f32.partialorder %v1868, 0.0004427343
      %v1870 = vsel %vm1869, %v1867, %v1864
      %v1871 = vadd.f32 %v1777, 1.0
      %v1872 = vlog2.pop %v1871
      %v1873 = vmul.f32 %v1872, 0.6931472
      %v1874 = vmul.f32 -0.5, %v1777
      %v1875 = vadd.f32 %v1874, 1.0
      %v1876 = vmul.f32 %v1875, %v1777
      %v1877 = vand.u32 2147483647, %v1777
      %vm1878 = vcmp.lt.f32.partialorder %v1877, 0.0004427343
      %v1879 = vsel %vm1878, %v1876, %v1873
      %v1880 = vadd.f32 %v1779, 1.0
      %v1881 = vlog2.pop %v1880
      %v1882 = vmul.f32 %v1881, 0.6931472
      %v1883 = vmul.f32 -0.5, %v1779
      %v1884 = vadd.f32 %v1883, 1.0
      %v1885 = vmul.f32 %v1884, %v1779
      %v1886 = vand.u32 2147483647, %v1779
      %vm1887 = vcmp.lt.f32.partialorder %v1886, 0.0004427343
      %v1888 = vsel %vm1887, %v1885, %v1882
      %v1889 = vadd.f32 %v1781, 1.0
      %v1890 = vlog2.pop %v1889
      %v1891 = vmul.f32 %v1890, 0.6931472
      %v1892 = vmul.f32 -0.5, %v1781
      %v1893 = vadd.f32 %v1892, 1.0
      %v1894 = vmul.f32 %v1893, %v1781
      %v1895 = vand.u32 2147483647, %v1781
      %vm1896 = vcmp.lt.f32.partialorder %v1895, 0.0004427343
      %v1897 = vsel %vm1896, %v1894, %v1891
      %v1898 = vadd.f32 %v1783, 1.0
      %v1899 = vlog2.pop %v1898
      %v1900 = vmul.f32 %v1899, 0.6931472
      %v1901 = vmul.f32 -0.5, %v1783
      %v1902 = vadd.f32 %v1901, 1.0
      %v1903 = vmul.f32 %v1902, %v1783
      %v1904 = vand.u32 2147483647, %v1783
      %vm1905 = vcmp.lt.f32.partialorder %v1904, 0.0004427343
      %v1906 = vsel %vm1905, %v1903, %v1900
      %v1907 = vadd.f32 %v1785, 1.0
      %v1908 = vlog2.pop %v1907
      %v1909 = vmul.f32 %v1908, 0.6931472
      %v1910 = vmul.f32 -0.5, %v1785
      %v1911 = vadd.f32 %v1910, 1.0
      %v1912 = vmul.f32 %v1911, %v1785
      %v1913 = vand.u32 2147483647, %v1785
      %vm1914 = vcmp.lt.f32.partialorder %v1913, 0.0004427343
      %v1915 = vsel %vm1914, %v1912, %v1909
      %v1916 = vadd.f32 %v1787, 1.0
      %v1917 = vlog2.pop %v1916
      %v1918 = vmul.f32 %v1917, 0.6931472
      %v1919 = vmul.f32 -0.5, %v1787
      %v1920 = vadd.f32 %v1919, 1.0
      %v1921 = vmul.f32 %v1920, %v1787
      %v1922 = vand.u32 2147483647, %v1787
      %vm1923 = vcmp.lt.f32.partialorder %v1922, 0.0004427343
      %v1924 = vsel %vm1923, %v1921, %v1918
      %v1925 = vadd.f32 %v1789, 1.0
      %v1926 = vlog2.pop %v1925
      %v1927 = vmul.f32 %v1926, 0.6931472
      %v1928 = vmul.f32 -0.5, %v1789
      %v1929 = vadd.f32 %v1928, 1.0
      %v1930 = vmul.f32 %v1929, %v1789
      %v1931 = vand.u32 2147483647, %v1789
      %vm1932 = vcmp.lt.f32.partialorder %v1931, 0.0004427343
      %v1933 = vsel %vm1932, %v1930, %v1927
      %v1934 = vsel %vm1726, %v1645, %v1798
      %v1935 = vsel %vm1727, %v1650, %v1807
      %v1936 = vsel %vm1728, %v1655, %v1816
      %v1937 = vsel %vm1729, %v1660, %v1825
      %v1938 = vsel %vm1730, %v1665, %v1834
      %v1939 = vsel %vm1731, %v1670, %v1843
      %v1940 = vsel %vm1732, %v1675, %v1852
      %v1941 = vsel %vm1733, %v1680, %v1861
      %v1942 = vsel %vm1734, %v1685, %v1870
      %v1943 = vsel %vm1735, %v1690, %v1879
      %v1944 = vsel %vm1736, %v1695, %v1888
      %v1945 = vsel %vm1737, %v1700, %v1897
      %v1946 = vsel %vm1738, %v1705, %v1906
      %v1947 = vsel %vm1739, %v1710, %v1915
      %v1948 = vsel %vm1740, %v1715, %v1924
      %v1949 = vsel %vm1741, %v1720, %v1933
      %v1950 = vadd.f32 %v1934, 0.0001
      %v1951 = vadd.f32 %v1935, 0.0001
      %v1952 = vadd.f32 %v1936, 0.0001
      %v1953 = vadd.f32 %v1937, 0.0001
      %v1954 = vadd.f32 %v1938, 0.0001
      %v1955 = vadd.f32 %v1939, 0.0001
      %v1956 = vadd.f32 %v1940, 0.0001
      %v1957 = vadd.f32 %v1941, 0.0001
      %v1958 = vadd.f32 %v1942, 0.0001
      %v1959 = vadd.f32 %v1943, 0.0001
      %v1960 = vadd.f32 %v1944, 0.0001
      %v1961 = vadd.f32 %v1945, 0.0001
      %v1962 = vadd.f32 %v1946, 0.0001
      %v1963 = vadd.f32 %v1947, 0.0001
      %v1964 = vadd.f32 %v1948, 0.0001
      %v1965 = vadd.f32 %v1949, 0.0001
      %v1966 = vsel %vm1725, %v1645, %v1950
      %v1967 = vsel %vm1725, %v1650, %v1951
      %v1968 = vsel %vm1725, %v1655, %v1952
      %v1969 = vsel %vm1725, %v1660, %v1953
      %v1970 = vsel %vm1725, %v1665, %v1954
      %v1971 = vsel %vm1725, %v1670, %v1955
      %v1972 = vsel %vm1725, %v1675, %v1956
      %v1973 = vsel %vm1725, %v1680, %v1957
      %v1974 = vsel %vm1725, %v1685, %v1958
      %v1975 = vsel %vm1725, %v1690, %v1959
      %v1976 = vsel %vm1725, %v1695, %v1960
      %v1977 = vsel %vm1725, %v1700, %v1961
      %v1978 = vsel %vm1725, %v1705, %v1962
      %v1979 = vsel %vm1725, %v1710, %v1963
      %v1980 = vsel %vm1725, %v1715, %v1964
      %v1981 = vsel %vm1725, %v1720, %v1965
      %1982 = vst.msk [vmem:[%s253] sm:$0xff] %vm283, %v1966
      %1983 = vst.msk [vmem:[%s253 + $0x8] sm:$0xff] %vm283, %v1967
      %1984 = vst.msk [vmem:[%s253 + $0x10] sm:$0xff] %vm283, %v1968
      %1985 = vst.msk [vmem:[%s253 + $0x18] sm:$0xff] %vm283, %v1969
      %1986 = vst.msk [vmem:[%s253 + $0x20] sm:$0xff] %vm283, %v1970
      %1987 = vst.msk [vmem:[%s253 + $0x28] sm:$0xff] %vm283, %v1971
      %1988 = vst.msk [vmem:[%s253 + $0x30] sm:$0xff] %vm283, %v1972
      %1989 = vst.msk [vmem:[%s253 + $0x38] sm:$0xff] %vm283, %v1973
      %1990 = vst.msk [vmem:[%s253 + $0x40] sm:$0xff] %vm283, %v1974
      %1991 = vst.msk [vmem:[%s253 + $0x48] sm:$0xff] %vm283, %v1975
      %1992 = vst.msk [vmem:[%s253 + $0x50] sm:$0xff] %vm283, %v1976
      %1993 = vst.msk [vmem:[%s253 + $0x58] sm:$0xff] %vm283, %v1977
      %1994 = vst.msk [vmem:[%s253 + $0x60] sm:$0xff] %vm283, %v1978
      %1995 = vst.msk [vmem:[%s253 + $0x68] sm:$0xff] %vm283, %v1979
      %1996 = vst.msk [vmem:[%s253 + $0x70] sm:$0xff] %vm283, %v1980
      %1997 = vst.msk [vmem:[%s253 + $0x78] sm:$0xff] %vm283, %v1981
      %s1998 = smul.u32 16, %s17
      %p1999 = scmp.lt.s32.totalorder %s1998, 31
      %s2000 = scalar_select %p1999, %s1998, 31
      %s2001 = smul.addr %s2000, 8
      %s2002 = scalar_lea.vmem %s6, %s2001
      // Predicated region
      $region45: #{mlp_forward.1} parent=43 // pred_check
        %p2003 = pneg %p166
      $region46: #{mlp_forward.1} parent=43 // pred_check_branch
        %2005 = sbr.rel (%p2003) target = $region48
      $region47: #{mlp_forward.1} parent=43 // pred_region
        %s2006 = smul.u32 16, %s17
      $region48: #{mlp_forward.1} parent=43 // pred_fallthru
        _
    $region44: #{mlp_forward.1} parent=5 // pred_fallthru
      _
    %p2007 = scmp.le.s32.totalorder 2, %s12
    // Predicated region
    $region49: #{mlp_forward.1} parent=5 // pred_check
      %p2008 = pneg %p2007
    $region50: #{mlp_forward.1} parent=5 // pred_check_branch
      %2010 = sbr.rel (%p2008) target = $region52
    $region51: #{mlp_forward.1} parent=5 // pred_region
      %s2011 = ssub.s32 %s12, 2
      // Predicated region
      $region53: #{mlp_forward.1} parent=51 // pred_check
        %p2012 = pneg %p172
      $region54: #{mlp_forward.1} parent=51 // pred_check_branch
        %2014 = sbr.rel (%p2012) target = $region56
      $region55: #{mlp_forward.1} parent=51 // pred_region
        %s2015 = smul.u32 16, %s18
        %p2016 = scmp.lt.s32.totalorder %s2015, 31
        %s2017 = scalar_select %p2016, %s2015, 31
        %s2018 = smul.addr %s2017, 8
        %s2019 = scalar_lea.vmem %s6, %s2018
      $region56: #{mlp_forward.1} parent=51 // pred_fallthru
        _
    $region52: #{mlp_forward.1} parent=5 // pred_fallthru
      _
  $region6: #{mlp_forward.1} parent=0 // loop_footer
    %s16 = sadd.s32 1, %s12
  $region7: #{mlp_forward.1} parent=0 // loop_footer_branch
    %11 = sbr.rel target = $region3
  $region8: #{mlp_forward.1} parent=0 // loop_exit
    _

</llo_original>
